<compile_context>
chip_gen: v7x
topology: tpu7x:2x2x1
jax: 0.10.0
libtpu: 0.0.40
codegen_flags: <defaults>
</compile_context>

<pallas_src>
import jax
import jax.numpy as jnp
from jax import lax
from jax.experimental import pallas as pl
from jax.experimental.pallas import tpu as pltpu

LN_EPS = 1e-5  # PyTorch nn.LayerNorm default


def _round_up(n, m):
    return ((n + m - 1) // m) * m


def _pick_tile_b(batch):
    """Batch tile: big enough to fill the MXU, >=2 grid steps when possible (v7x 2 TCs)."""
    if batch >= 1024:
        return 512
    if batch >= 512:
        return 256
    if batch >= 32:
        return _round_up((batch + 1) // 2, 16)  # two grid steps
    return 16


def _make_kernel(d_hid_p, d_out, d_out_p):
    def kernel(x_ref, wcat_ref, bcat_ref, w2_ref, b2_ref, g_ref, beta_ref, o_ref):
        x = x_ref[...]                                        # (tile_b, d_in) bf16
        # Fused matmul for the two Linears that share x:  [h_pre | s2]
        hs = jnp.dot(x, wcat_ref[...],
                     preferred_element_type=jnp.float32) + bcat_ref[...]
        h = jnp.maximum(hs[:, :d_hid_p], 0.0).astype(jnp.bfloat16)
        s2 = hs[:, d_hid_p:]                                  # (tile_b, d_out_p) f32
        s1 = jnp.dot(h, w2_ref[...],
                     preferred_element_type=jnp.float32) + b2_ref[...]
        z = s1 + s2                                           # f32

        # LayerNorm over the real d_out columns (padded columns excluded).
        if d_out == d_out_p:
            mean = jnp.mean(z, axis=-1, keepdims=True)
            cen = z - mean
            var = jnp.mean(cen * cen, axis=-1, keepdims=True)
        else:
            inv_n = jnp.float32(1.0 / d_out)
            mask = (lax.broadcasted_iota(jnp.int32, (1, d_out_p), 1)
                    < d_out).astype(jnp.float32)
            mean = jnp.sum(z * mask, axis=-1, keepdims=True) * inv_n
            cen = (z - mean) * mask
            var = jnp.sum(cen * cen, axis=-1, keepdims=True) * inv_n

        zhat = (z - mean) * lax.rsqrt(var + LN_EPS)
        # gamma is zero-padded, so padded output columns are harmless (sliced off later).
        o_ref[...] = (zhat * g_ref[...] + beta_ref[...]).astype(o_ref.dtype)

    return kernel


def _build_call(tile_b, n_rows, d_in, d_hid_p, d_out, d_out_p,
                *, buffered_weights, vmem_limit, cost):
    n_cat = d_hid_p + d_out_p

    if buffered_weights:
        def const_spec(shape):
            # Weights never change across the grid: single-buffer them in VMEM.
            return pl.BlockSpec(shape, lambda i: (0, 0),
                                pipeline_mode=pl.Buffered(1))
    else:
        def const_spec(shape):
            return pl.BlockSpec(shape, lambda i: (0, 0))

    in_specs = [
        pl.BlockSpec((tile_b, d_in), lambda i: (i, 0)),   # x (bf16), row tiles
        const_spec((d_in, n_cat)),                        # [W1 | W3]  bf16
        const_spec((1, n_cat)),                           # [b1 | b3]  f32
        const_spec((d_hid_p, d_out_p)),                   # W2         bf16
        const_spec((1, d_out_p)),                         # b2         f32
        const_spec((1, d_out_p)),                         # gamma      f32
        const_spec((1, d_out_p)),                         # beta       f32
    ]
    out_specs = pl.BlockSpec((tile_b, d_out_p), lambda i: (i, 0))

    return pl.pallas_call(
        _make_kernel(d_hid_p, d_out, d_out_p),
        out_shape=jax.ShapeDtypeStruct((n_rows, d_out_p), jnp.float32),
        grid_spec=pltpu.PrefetchScalarGridSpec(
            num_scalar_prefetch=0,
            grid=(n_rows // tile_b,),
            in_specs=in_specs,
            out_specs=out_specs,
        ),
        compiler_params=pltpu.CompilerParams(
            dimension_semantics=("parallel",),
            vmem_limit_bytes=vmem_limit,
        ),
        cost_estimate=cost,
    )


def pack_params(p):
    """Pad to lane-dense (multiple-of-128) widths, fuse [W1|W3], cast weights to bf16."""
    d_in, d_hid = p["w1"].shape
    d_out = p["w2"].shape[1]
    d_hid_p = _round_up(d_hid, 128)
    d_out_p = _round_up(d_out, 128)
    bf = jnp.bfloat16

    def pad2(a, rows, cols, dtype):
        r, c = a.shape
        return jnp.pad(a.astype(dtype), ((0, rows - r), (0, cols - c)))

    w1 = pad2(p["w1"], d_in, d_hid_p, bf)
    w3 = pad2(p["w3"], d_in, d_out_p, bf)
    b1 = pad2(p["b1"], 1, d_hid_p, jnp.float32)
    b3 = pad2(p["b3"], 1, d_out_p, jnp.float32)

    return {
        "wcat": jnp.concatenate([w1, w3], axis=1),        # (d_in, d_hid_p + d_out_p)
        "bcat": jnp.concatenate([b1, b3], axis=1),        # (1,    d_hid_p + d_out_p)
        "w2": pad2(p["w2"], d_hid_p, d_out_p, bf),
        "b2": pad2(p["b2"], 1, d_out_p, jnp.float32),
        "gamma": pad2(p["gamma"], 1, d_out_p, jnp.float32),
        "beta": pad2(p["beta"], 1, d_out_p, jnp.float32),
        "d_in": d_in, "d_hid_p": d_hid_p, "d_out": d_out, "d_out_p": d_out_p,
    }


def resblock2(x, packed, *, tile_b=None):
    """x: (B, d_in) float32. packed: output of pack_params()."""
    B, d_in = x.shape
    assert d_in == packed["d_in"]
    d_hid_p, d_out, d_out_p = packed["d_hid_p"], packed["d_out"], packed["d_out_p"]

    if tile_b is None:
        tile_b = _pick_tile_b(B)
    n_rows = _round_up(B, tile_b)

    x16 = x.astype(jnp.bfloat16)
    if n_rows != B:
        x16 = jnp.pad(x16, ((0, n_rows - B), (0, 0)))

    # VMEM budget / scheduler hints.
    n_cat = d_hid_p + d_out_p
    w_bytes = (d_in * n_cat + d_hid_p * d_out_p) * 2
    b_bytes = (n_cat + 3 * d_out_p) * 4
    tile_io = tile_b * d_in * 2 + tile_b * d_out_p * 4
    inter = tile_b * (n_cat + 3 * d_out_p) * 4
    est = 2 * tile_io + 2 * (w_bytes + b_bytes) + inter
    vmem_limit = int(min(max(2 * est, 32 * 2**20), 48 * 2**20))  # headroom under v7x 64 MiB
    cost = pl.CostEstimate(
        flops=2 * n_rows * (d_in * n_cat + d_hid_p * d_out_p) + 8 * n_rows * d_out_p,
        transcendentals=n_rows,  # one rsqrt per row
        bytes_accessed=n_rows * d_in * 2 + w_bytes + b_bytes + n_rows * d_out_p * 4,
    )

    args = (x16, packed["wcat"], packed["bcat"], packed["w2"], packed["b2"],
            packed["gamma"], packed["beta"])

    out = None
    for buffered in (True, False):
        try:
            call = _build_call(tile_b, n_rows, d_in, d_hid_p, d_out, d_out_p,
                               buffered_weights=buffered,
                               vmem_limit=vmem_limit, cost=cost)
            out = jax.block_until_ready(call(*args))
            break
        except Exception:
            if not buffered:
                raise
            # pl.Buffered(1) unsupported on this jax/Mosaic version: fall back to the
            # default double-buffered weight pipeline (identical results).
    return out[:B, :d_out]


def make_params(key, d_in, d_out):
    """Deterministic synthetic parameters (shapes follow ResBlock2.__init__),
    stored pre-transposed as (in_features, out_features)."""
    d_hid = 2 * d_in
    ks = jax.random.split(key, 8)
    s = 0.1
    return {
        "w1": s * jax.random.normal(ks[0], (d_in, d_hid), jnp.float32),
        "b1": s * jax.random.normal(ks[1], (1, d_hid), jnp.float32),
        "w2": s * jax.random.normal(ks[2], (d_hid, d_out), jnp.float32),
        "b2": s * jax.random.normal(ks[3], (1, d_out), jnp.float32),
        "w3": s * jax.random.normal(ks[4], (d_in, d_out), jnp.float32),
        "b3": s * jax.random.normal(ks[5], (1, d_out), jnp.float32),
        "gamma": 1.0 + s * jax.random.normal(ks[6], (1, d_out), jnp.float32),
        "beta": s * jax.random.normal(ks[7], (1, d_out), jnp.float32),
    }


def resblock2_ref(x, p):
    """Pure-JAX reference mirroring the PyTorch module, using the same bf16-in /
    f32-accumulate matmul numerics as the kernel."""
    bf = jnp.bfloat16
    x16 = x.astype(bf)
    h = jnp.maximum(
        jnp.dot(x16, p["w1"].astype(bf), preferred_element_type=jnp.float32) + p["b1"],
        0.0)
    s1 = jnp.dot(h.astype(bf), p["w2"].astype(bf),
                 preferred_element_type=jnp.float32) + p["b2"]
    s2 = jnp.dot(x16, p["w3"].astype(bf),
                 preferred_element_type=jnp.float32) + p["b3"]
    z = s1 + s2
    mean = jnp.mean(z, axis=-1, keepdims=True)
    var = jnp.mean((z - mean) ** 2, axis=-1, keepdims=True)
    return (z - mean) / jnp.sqrt(var + LN_EPS) * p["gamma"] + p["beta"]


if __name__ == "__main__":
    key = jax.random.PRNGKey(0)
    k_x, k_p = jax.random.split(key)

    B, D_IN, D_OUT = 256, 32, 16
    x = jax.random.normal(k_x, (B, D_IN), jnp.float32)
    params = make_params(k_p, D_IN, D_OUT)
    packed = pack_params(params)

    out = resblock2(x, packed)          # tile_b=128 -> grid of 2 (feeds both v7x TCs)
    out = jax.block_until_ready(out)

    ref = resblock2_ref(x, params)
    assert out.shape == (B, D_OUT)
    assert jnp.allclose(out, ref, atol=2e-3, rtol=2e-3), \
        float(jnp.max(jnp.abs(out - ref)))

    print("KERNEL_OK")
</pallas_src>

<mosaic_0001>
module attributes {stable_mosaic.version = 11 : i64} {
  func.func @kernel(%arg0: i32, %arg1: memref<128x32xbf16, #tpu.memory_space<vmem>>, %arg2: memref<32x256xbf16, #tpu.memory_space<vmem>>, %arg3: memref<1x256xf32, #tpu.memory_space<vmem>>, %arg4: memref<128x128xbf16, #tpu.memory_space<vmem>>, %arg5: memref<1x128xf32, #tpu.memory_space<vmem>>, %arg6: memref<1x128xf32, #tpu.memory_space<vmem>>, %arg7: memref<1x128xf32, #tpu.memory_space<vmem>>, %arg8: memref<128x128xf32, #tpu.memory_space<vmem>>) attributes {dimension_semantics = [#tpu.dimension_semantics<parallel>], iteration_bounds = array<i64: 2>, scalar_prefetch = 0 : i64, scratch_operands = 0 : i64, tpu.core_type = #tpu.core_type<tc>, window_params = [{transform_indices = @transform_0, window_bounds = array<i64: 128, 32>}, {pipeline_mode = #tpu.pipeline_mode<synchronous>, transform_indices = @transform_1, window_bounds = array<i64: 32, 256>}, {pipeline_mode = #tpu.pipeline_mode<synchronous>, transform_indices = @transform_2, window_bounds = array<i64: 1, 256>}, {pipeline_mode = #tpu.pipeline_mode<synchronous>, transform_indices = @transform_3, window_bounds = array<i64: 128, 128>}, {pipeline_mode = #tpu.pipeline_mode<synchronous>, transform_indices = @transform_4, window_bounds = array<i64: 1, 128>}, {pipeline_mode = #tpu.pipeline_mode<synchronous>, transform_indices = @transform_5, window_bounds = array<i64: 1, 128>}, {pipeline_mode = #tpu.pipeline_mode<synchronous>, transform_indices = @transform_6, window_bounds = array<i64: 1, 128>}, {transform_indices = @transform_7, window_bounds = array<i64: 128, 128>}]} {
    %c0 = arith.constant 0 : index
    %c0_0 = arith.constant 0 : index
    %0 = vector.load %arg1[%c0, %c0_0] : memref<128x32xbf16, #tpu.memory_space<vmem>>, vector<128x32xbf16>
    %c0_1 = arith.constant 0 : index
    %c0_2 = arith.constant 0 : index
    %1 = vector.load %arg2[%c0_1, %c0_2] : memref<32x256xbf16, #tpu.memory_space<vmem>>, vector<32x256xbf16>
    %cst = arith.constant dense<0.000000e+00> : vector<128x256xf32>
    %2 = tpu.matmul %0, %1, %cst {dimension_numbers = #tpu.dot_dimension_numbers<[1], [0], [0], [1], [0, 0, 1, 1], [], []>} : vector<128x32xbf16>, vector<32x256xbf16>, vector<128x256xf32> -> vector<128x256xf32>
    %c0_3 = arith.constant 0 : index
    %c0_4 = arith.constant 0 : index
    %3 = vector.load %arg3[%c0_3, %c0_4] : memref<1x256xf32, #tpu.memory_space<vmem>>, vector<1x256xf32>
    %4 = vector.broadcast %3 : vector<1x256xf32> to vector<128x256xf32>
    %5 = arith.addf %2, %4 : vector<128x256xf32>
    %6 = vector.extract_strided_slice %5 {offsets = [0, 0], sizes = [128, 128], strides = [1, 1]} : vector<128x256xf32> to vector<128x128xf32>
    %cst_5 = arith.constant 0.000000e+00 : f32
    %7 = vector.broadcast %cst_5 : f32 to vector<128x128xf32>
    %8 = arith.maximumf %6, %7 : vector<128x128xf32>
    %9 = arith.truncf %8 : vector<128x128xf32> to vector<128x128xbf16>
    %10 = vector.extract_strided_slice %5 {offsets = [0, 128], sizes = [128, 128], strides = [1, 1]} : vector<128x256xf32> to vector<128x128xf32>
    %c0_6 = arith.constant 0 : index
    %c0_7 = arith.constant 0 : index
    %11 = vector.load %arg4[%c0_6, %c0_7] : memref<128x128xbf16, #tpu.memory_space<vmem>>, vector<128x128xbf16>
    %cst_8 = arith.constant dense<0.000000e+00> : vector<128x128xf32>
    %12 = tpu.matmul %9, %11, %cst_8 {dimension_numbers = #tpu.dot_dimension_numbers<[1], [0], [0], [1], [0, 0, 1, 1], [], []>} : vector<128x128xbf16>, vector<128x128xbf16>, vector<128x128xf32> -> vector<128x128xf32>
    %c0_9 = arith.constant 0 : index
    %c0_10 = arith.constant 0 : index
    %13 = vector.load %arg5[%c0_9, %c0_10] : memref<1x128xf32, #tpu.memory_space<vmem>>, vector<1x128xf32>
    %14 = vector.broadcast %13 : vector<1x128xf32> to vector<128x128xf32>
    %15 = arith.addf %12, %14 : vector<128x128xf32>
    %16 = arith.addf %15, %10 : vector<128x128xf32>
    %17 = tpu.iota {dimensions = array<i32: 1>} : vector<1x128xi32>
    %c16_i32 = arith.constant 16 : i32
    %18 = vector.broadcast %c16_i32 : i32 to vector<1x128xi32>
    %19 = arith.cmpi slt, %17, %18 : vector<1x128xi32>
    %20 = arith.extui %19 : vector<1x128xi1> to vector<1x128xi32>
    %21 = arith.sitofp %20 : vector<1x128xi32> to vector<1x128xf32>
    %22 = vector.broadcast %21 : vector<1x128xf32> to vector<128x128xf32>
    %23 = arith.mulf %16, %22 : vector<128x128xf32>
    %cst_11 = arith.constant dense<0.000000e+00> : vector<128xf32>
    %24 = vector.multi_reduction <add>, %23, %cst_11 [1] : vector<128x128xf32> to vector<128xf32>
    %25 = vector.shape_cast %24 : vector<128xf32> to vector<128x1xf32>
    %cst_12 = arith.constant 6.250000e-02 : f32
    %26 = vector.broadcast %cst_12 : f32 to vector<128x1xf32>
    %27 = arith.mulf %25, %26 : vector<128x1xf32>
    %28 = vector.broadcast %27 : vector<128x1xf32> to vector<128x128xf32>
    %29 = arith.subf %16, %28 : vector<128x128xf32>
    %30 = vector.broadcast %21 : vector<1x128xf32> to vector<128x128xf32>
    %31 = arith.mulf %29, %30 : vector<128x128xf32>
    %32 = arith.mulf %31, %31 : vector<128x128xf32>
    %cst_13 = arith.constant dense<0.000000e+00> : vector<128xf32>
    %33 = vector.multi_reduction <add>, %32, %cst_13 [1] : vector<128x128xf32> to vector<128xf32>
    %34 = vector.shape_cast %33 : vector<128xf32> to vector<128x1xf32>
    %cst_14 = arith.constant 6.250000e-02 : f32
    %35 = vector.broadcast %cst_14 : f32 to vector<128x1xf32>
    %36 = arith.mulf %34, %35 : vector<128x1xf32>
    %37 = vector.broadcast %27 : vector<128x1xf32> to vector<128x128xf32>
    %38 = arith.subf %16, %37 : vector<128x128xf32>
    %cst_15 = arith.constant 9.99999974E-6 : f32
    %39 = vector.broadcast %cst_15 : f32 to vector<128x1xf32>
    %40 = arith.addf %36, %39 : vector<128x1xf32>
    %41 = math.rsqrt %40 : vector<128x1xf32>
    %42 = vector.broadcast %41 : vector<128x1xf32> to vector<128x128xf32>
    %43 = arith.mulf %38, %42 : vector<128x128xf32>
    %c0_16 = arith.constant 0 : index
    %c0_17 = arith.constant 0 : index
    %44 = vector.load %arg6[%c0_16, %c0_17] : memref<1x128xf32, #tpu.memory_space<vmem>>, vector<1x128xf32>
    %45 = vector.broadcast %44 : vector<1x128xf32> to vector<128x128xf32>
    %46 = arith.mulf %43, %45 : vector<128x128xf32>
    %c0_18 = arith.constant 0 : index
    %c0_19 = arith.constant 0 : index
    %47 = vector.load %arg7[%c0_18, %c0_19] : memref<1x128xf32, #tpu.memory_space<vmem>>, vector<1x128xf32>
    %48 = vector.broadcast %47 : vector<1x128xf32> to vector<128x128xf32>
    %49 = arith.addf %46, %48 : vector<128x128xf32>
    %c0_20 = arith.constant 0 : index
    %c0_21 = arith.constant 0 : index
    %50 = vector.load %arg8[%c0_20, %c0_21] : memref<128x128xf32, #tpu.memory_space<vmem>>, vector<128x128xf32>
    tpu.vector_store %arg8[%c0_20, %c0_21], %49 {strides = array<i32>} : memref<128x128xf32, #tpu.memory_space<vmem>>, vector<128x128xf32>,
    return
  }
  func.func @transform_0(%arg0: i32) -> (i32, i32) {
    %c0_i32 = arith.constant 0 : i32
    %c0_i32_0 = arith.constant 0 : i32
    return %arg0, %c0_i32 : i32, i32
  }
  func.func @transform_1(%arg0: i32) -> (i32, i32) {
    %c0_i32 = arith.constant 0 : i32
    %c0_i32_0 = arith.constant 0 : i32
    %c0_i32_1 = arith.constant 0 : i32
    return %c0_i32, %c0_i32_0 : i32, i32
  }
  func.func @transform_2(%arg0: i32) -> (i32, i32) {
    %c0_i32 = arith.constant 0 : i32
    %c0_i32_0 = arith.constant 0 : i32
    %c0_i32_1 = arith.constant 0 : i32
    return %c0_i32, %c0_i32_0 : i32, i32
  }
  func.func @transform_3(%arg0: i32) -> (i32, i32) {
    %c0_i32 = arith.constant 0 : i32
    %c0_i32_0 = arith.constant 0 : i32
    %c0_i32_1 = arith.constant 0 : i32
    return %c0_i32, %c0_i32_0 : i32, i32
  }
  func.func @transform_4(%arg0: i32) -> (i32, i32) {
    %c0_i32 = arith.constant 0 : i32
    %c0_i32_0 = arith.constant 0 : i32
    %c0_i32_1 = arith.constant 0 : i32
    return %c0_i32, %c0_i32_0 : i32, i32
  }
  func.func @transform_5(%arg0: i32) -> (i32, i32) {
    %c0_i32 = arith.constant 0 : i32
    %c0_i32_0 = arith.constant 0 : i32
    %c0_i32_1 = arith.constant 0 : i32
    return %c0_i32, %c0_i32_0 : i32, i32
  }
  func.func @transform_6(%arg0: i32) -> (i32, i32) {
    %c0_i32 = arith.constant 0 : i32
    %c0_i32_0 = arith.constant 0 : i32
    %c0_i32_1 = arith.constant 0 : i32
    return %c0_i32, %c0_i32_0 : i32, i32
  }
  func.func @transform_7(%arg0: i32) -> (i32, i32) {
    %c0_i32 = arith.constant 0 : i32
    %c0_i32_0 = arith.constant 0 : i32
    return %arg0, %c0_i32 : i32, i32
  }
}

module attributes {stable_mosaic.version = 11 : i64} {
  func.func @kernel(%arg0: i32, %arg1: memref<128x32xbf16, #tpu.memory_space<vmem>>, %arg2: memref<32x256xbf16, #tpu.memory_space<vmem>>, %arg3: memref<1x256xf32, #tpu.memory_space<vmem>>, %arg4: memref<128x128xbf16, #tpu.memory_space<vmem>>, %arg5: memref<1x128xf32, #tpu.memory_space<vmem>>, %arg6: memref<1x128xf32, #tpu.memory_space<vmem>>, %arg7: memref<1x128xf32, #tpu.memory_space<vmem>>, %arg8: memref<128x128xf32, #tpu.memory_space<vmem>>) attributes {dimension_semantics = [#tpu.dimension_semantics<parallel>], iteration_bounds = array<i64: 2>, scalar_prefetch = 0 : i64, scratch_operands = 0 : i64, tpu.core_type = #tpu.core_type<tc>, window_params = [{transform_indices = @transform_0, window_bounds = array<i64: 128, 32>}, {pipeline_mode = #tpu.pipeline_mode<synchronous>, transform_indices = @transform_1, window_bounds = array<i64: 32, 256>}, {pipeline_mode = #tpu.pipeline_mode<synchronous>, transform_indices = @transform_2, window_bounds = array<i64: 1, 256>}, {pipeline_mode = #tpu.pipeline_mode<synchronous>, transform_indices = @transform_3, window_bounds = array<i64: 128, 128>}, {pipeline_mode = #tpu.pipeline_mode<synchronous>, transform_indices = @transform_4, window_bounds = array<i64: 1, 128>}, {pipeline_mode = #tpu.pipeline_mode<synchronous>, transform_indices = @transform_5, window_bounds = array<i64: 1, 128>}, {pipeline_mode = #tpu.pipeline_mode<synchronous>, transform_indices = @transform_6, window_bounds = array<i64: 1, 128>}, {transform_indices = @transform_7, window_bounds = array<i64: 128, 128>}]} {
    %c0 = arith.constant 0 : index
    %c0_0 = arith.constant 0 : index
    %0 = vector.load %arg1[%c0, %c0_0] : memref<128x32xbf16, #tpu.memory_space<vmem>>, vector<128x32xbf16>
    %c0_1 = arith.constant 0 : index
    %c0_2 = arith.constant 0 : index
    %1 = vector.load %arg2[%c0_1, %c0_2] : memref<32x256xbf16, #tpu.memory_space<vmem>>, vector<32x256xbf16>
    %cst = arith.constant dense<0.000000e+00> : vector<128x256xf32>
    %2 = tpu.matmul %0, %1, %cst {dimension_numbers = #tpu.dot_dimension_numbers<[1], [0], [0], [1], [0, 0, 1, 1], [], []>} : vector<128x32xbf16>, vector<32x256xbf16>, vector<128x256xf32> -> vector<128x256xf32>
    %c0_3 = arith.constant 0 : index
    %c0_4 = arith.constant 0 : index
    %3 = vector.load %arg3[%c0_3, %c0_4] : memref<1x256xf32, #tpu.memory_space<vmem>>, vector<1x256xf32>
    %4 = vector.broadcast %3 : vector<1x256xf32> to vector<128x256xf32>
    %5 = arith.addf %2, %4 : vector<128x256xf32>
    %6 = vector.extract_strided_slice %5 {offsets = [0, 0], sizes = [128, 128], strides = [1, 1]} : vector<128x256xf32> to vector<128x128xf32>
    %cst_5 = arith.constant 0.000000e+00 : f32
    %7 = vector.broadcast %cst_5 : f32 to vector<128x128xf32>
    %8 = arith.maximumf %6, %7 : vector<128x128xf32>
    %9 = arith.truncf %8 : vector<128x128xf32> to vector<128x128xbf16>
    %10 = vector.extract_strided_slice %5 {offsets = [0, 128], sizes = [128, 128], strides = [1, 1]} : vector<128x256xf32> to vector<128x128xf32>
    %c0_6 = arith.constant 0 : index
    %c0_7 = arith.constant 0 : index
    %11 = vector.load %arg4[%c0_6, %c0_7] : memref<128x128xbf16, #tpu.memory_space<vmem>>, vector<128x128xbf16>
    %cst_8 = arith.constant dense<0.000000e+00> : vector<128x128xf32>
    %12 = tpu.matmul %9, %11, %cst_8 {dimension_numbers = #tpu.dot_dimension_numbers<[1], [0], [0], [1], [0, 0, 1, 1], [], []>} : vector<128x128xbf16>, vector<128x128xbf16>, vector<128x128xf32> -> vector<128x128xf32>
    %c0_9 = arith.constant 0 : index
    %c0_10 = arith.constant 0 : index
    %13 = vector.load %arg5[%c0_9, %c0_10] : memref<1x128xf32, #tpu.memory_space<vmem>>, vector<1x128xf32>
    %14 = vector.broadcast %13 : vector<1x128xf32> to vector<128x128xf32>
    %15 = arith.addf %12, %14 : vector<128x128xf32>
    %16 = arith.addf %15, %10 : vector<128x128xf32>
    %17 = tpu.iota {dimensions = array<i32: 1>} : vector<1x128xi32>
    %c16_i32 = arith.constant 16 : i32
    %18 = vector.broadcast %c16_i32 : i32 to vector<1x128xi32>
    %19 = arith.cmpi slt, %17, %18 : vector<1x128xi32>
    %20 = arith.extui %19 : vector<1x128xi1> to vector<1x128xi32>
    %21 = arith.sitofp %20 : vector<1x128xi32> to vector<1x128xf32>
    %22 = vector.broadcast %21 : vector<1x128xf32> to vector<128x128xf32>
    %23 = arith.mulf %16, %22 : vector<128x128xf32>
    %cst_11 = arith.constant dense<0.000000e+00> : vector<128xf32>
    %24 = vector.multi_reduction <add>, %23, %cst_11 [1] : vector<128x128xf32> to vector<128xf32>
    %25 = vector.shape_cast %24 : vector<128xf32> to vector<128x1xf32>
    %cst_12 = arith.constant 6.250000e-02 : f32
    %26 = vector.broadcast %cst_12 : f32 to vector<128x1xf32>
    %27 = arith.mulf %25, %26 : vector<128x1xf32>
    %28 = vector.broadcast %27 : vector<128x1xf32> to vector<128x128xf32>
    %29 = arith.subf %16, %28 : vector<128x128xf32>
    %30 = vector.broadcast %21 : vector<1x128xf32> to vector<128x128xf32>
    %31 = arith.mulf %29, %30 : vector<128x128xf32>
    %32 = arith.mulf %31, %31 : vector<128x128xf32>
    %cst_13 = arith.constant dense<0.000000e+00> : vector<128xf32>
    %33 = vector.multi_reduction <add>, %32, %cst_13 [1] : vector<128x128xf32> to vector<128xf32>
    %34 = vector.shape_cast %33 : vector<128xf32> to vector<128x1xf32>
    %cst_14 = arith.constant 6.250000e-02 : f32
    %35 = vector.broadcast %cst_14 : f32 to vector<128x1xf32>
    %36 = arith.mulf %34, %35 : vector<128x1xf32>
    %37 = vector.broadcast %27 : vector<128x1xf32> to vector<128x128xf32>
    %38 = arith.subf %16, %37 : vector<128x128xf32>
    %cst_15 = arith.constant 9.99999974E-6 : f32
    %39 = vector.broadcast %cst_15 : f32 to vector<128x1xf32>
    %40 = arith.addf %36, %39 : vector<128x1xf32>
    %41 = math.rsqrt %40 : vector<128x1xf32>
    %42 = vector.broadcast %41 : vector<128x1xf32> to vector<128x128xf32>
    %43 = arith.mulf %38, %42 : vector<128x128xf32>
    %c0_16 = arith.constant 0 : index
    %c0_17 = arith.constant 0 : index
    %44 = vector.load %arg6[%c0_16, %c0_17] : memref<1x128xf32, #tpu.memory_space<vmem>>, vector<1x128xf32>
    %45 = vector.broadcast %44 : vector<1x128xf32> to vector<128x128xf32>
    %46 = arith.mulf %43, %45 : vector<128x128xf32>
    %c0_18 = arith.constant 0 : index
    %c0_19 = arith.constant 0 : index
    %47 = vector.load %arg7[%c0_18, %c0_19] : memref<1x128xf32, #tpu.memory_space<vmem>>, vector<1x128xf32>
    %48 = vector.broadcast %47 : vector<1x128xf32> to vector<128x128xf32>
    %49 = arith.addf %46, %48 : vector<128x128xf32>
    %c0_20 = arith.constant 0 : index
    %c0_21 = arith.constant 0 : index
    %50 = vector.load %arg8[%c0_20, %c0_21] : memref<128x128xf32, #tpu.memory_space<vmem>>, vector<128x128xf32>
    tpu.vector_store %arg8[%c0_20, %c0_21], %49 {strides = array<i32>} : memref<128x128xf32, #tpu.memory_space<vmem>>, vector<128x128xf32>,
    return
  }
  func.func @transform_0(%arg0: i32) -> (i32, i32) {
    %c0_i32 = arith.constant 0 : i32
    %c0_i32_0 = arith.constant 0 : i32
    return %arg0, %c0_i32 : i32, i32
  }
  func.func @transform_1(%arg0: i32) -> (i32, i32) {
    %c0_i32 = arith.constant 0 : i32
    %c0_i32_0 = arith.constant 0 : i32
    %c0_i32_1 = arith.constant 0 : i32
    return %c0_i32, %c0_i32_0 : i32, i32
  }
  func.func @transform_2(%arg0: i32) -> (i32, i32) {
    %c0_i32 = arith.constant 0 : i32
    %c0_i32_0 = arith.constant 0 : i32
    %c0_i32_1 = arith.constant 0 : i32
    return %c0_i32, %c0_i32_0 : i32, i32
  }
  func.func @transform_3(%arg0: i32) -> (i32, i32) {
    %c0_i32 = arith.constant 0 : i32
    %c0_i32_0 = arith.constant 0 : i32
    %c0_i32_1 = arith.constant 0 : i32
    return %c0_i32, %c0_i32_0 : i32, i32
  }
  func.func @transform_4(%arg0: i32) -> (i32, i32) {
    %c0_i32 = arith.constant 0 : i32
    %c0_i32_0 = arith.constant 0 : i32
    %c0_i32_1 = arith.constant 0 : i32
    return %c0_i32, %c0_i32_0 : i32, i32
  }
  func.func @transform_5(%arg0: i32) -> (i32, i32) {
    %c0_i32 = arith.constant 0 : i32
    %c0_i32_0 = arith.constant 0 : i32
    %c0_i32_1 = arith.constant 0 : i32
    return %c0_i32, %c0_i32_0 : i32, i32
  }
  func.func @transform_6(%arg0: i32) -> (i32, i32) {
    %c0_i32 = arith.constant 0 : i32
    %c0_i32_0 = arith.constant 0 : i32
    %c0_i32_1 = arith.constant 0 : i32
    return %c0_i32, %c0_i32_0 : i32, i32
  }
  func.func @transform_7(%arg0: i32) -> (i32, i32) {
    %c0_i32 = arith.constant 0 : i32
    %c0_i32_0 = arith.constant 0 : i32
    return %arg0, %c0_i32 : i32, i32
  }
}

</mosaic_0001>

<llo_original>
// kernel: tpu_custom_call.1
$region0: #{tpu_custom_call.1}
  #allocation0 [shape = 'u32[]', space=smem, size = 0x4, offset = 0x4, fixed_abs, tag = 'smem constant byte address 0x4 - core index']
  #allocation1 [shape = 'u32[144,128]{1,0:T(1,128)}', space=vmem, size = 0x12000, scoped, tag = 'internal scratch']
  %s0 = inlined_call_operand.vmem [shape: bf16[256,32], index: 0, kind: input, shape index: {}]
  %s1 = inlined_call_operand.vmem [shape: bf16[32,256], index: 1, kind: input, shape index: {}]
  %s2 = inlined_call_operand.vmem [shape: f32[1,256], index: 2, kind: input, shape index: {}]
  %s3 = inlined_call_operand.vmem [shape: bf16[128,128], index: 3, kind: input, shape index: {}]
  %s4 = inlined_call_operand.vmem [shape: f32[1,128], index: 4, kind: input, shape index: {}]
  %s5 = inlined_call_operand.vmem [shape: f32[1,128], index: 5, kind: input, shape index: {}]
  %s6 = inlined_call_operand.vmem [shape: f32[1,128], index: 6, kind: input, shape index: {}]
  %s7 = inlined_call_operand.hbm [shape: f32[256,128], index: 7, kind: output, shape index: {}]
  %s8 = sld [smem:[#allocation0]]
  $region61: #{tpu_custom_call.1} parent=0
    _
  %s10 = ssub.s32 1, %s8
  %s11 = scalar_select 0, %s10, %s8
  $region1: #{tpu_custom_call.1} parent=0
    #allocation2 [shape = 'u8[131072]{0}', space=vmem, size = 0x20000, scoped, tag = 'output window, operand 0']
    #allocation3 [shape = 's32[2]{0}', space=sflag, size = 0x8, scoped, tag = 'scoped memory for tpu_custom_call.1']
    %12 = vsyncpa [#allocation3], 0
    %s13 = scalar_lea.sflag [#allocation3], 1
    %14 = vsyncpa %s13, 0
    loop: start=0, step=1, limit=4
    $region2: #{tpu_custom_call.1} parent=1 // loop_pre_header
      _
    $region3: #{tpu_custom_call.1} parent=1 // loop_header
      %s16 = sphi 0, %s20
      %p17 = scmp.ge.s32.totalorder %s16, 4
      %s26 = sphi 0, %s28
      %s29 = sphi 0, %s26
      %s30 = sphi 0, %s29
      %s46 = sphi 0, %s30
      %s50 = sphi 0, %s50
      %s52 = sphi 0, %s50
      %s53 = sphi 0, %s52
      %s67 = sphi 0, %s53
      %s71 = sphi 0, %s71
      %s73 = sphi 0, %s71
      %s74 = sphi 0, %s73
      %s88 = sphi 0, %s74
      %s92 = sphi 0, %s92
      %s94 = sphi 0, %s92
      %s95 = sphi 0, %s94
      %s109 = sphi 0, %s95
      %s113 = sphi 0, %s113
      %s115 = sphi 0, %s113
      %s116 = sphi 0, %s115
      %s130 = sphi 0, %s116
      %s134 = sphi 0, %s134
      %s136 = sphi 0, %s134
      %s137 = sphi 0, %s136
      %s151 = sphi 0, %s137
      %s155 = sphi 0, %s155
      %s157 = sphi 0, %s155
      %s158 = sphi 0, %s157
      %s172 = sphi 0, %s158
      %s178 = sphi 0, %s180
      %s181 = sphi 0, %s178
      %s182 = sphi 0, %s181
      %s198 = sphi 0, %s182
    $region4: #{tpu_custom_call.1} parent=1 // loop_header_branch
      %19 = sbr.rel (%p17) target = $region8
    $region5: #{tpu_custom_call.1} parent=1 // loop_body
      %s21 = ssub.s32 %s16, 1
      %s22 = ssub.s32 %s16, 2
      %s23 = sadd.s32 %s16, 1
      %s24 = ssub.s32 %s16, %s23
      %p25 = scmp.eq.s32.totalorder %s24, 0
      %s27 = sadd.s32 %s26, 1
      %s28 = scalar_select %p25, %s26, %s27
      %p31 = pneg %p25
      %p32 = scmp.eq.s32.totalorder %s16, 1
      %p33 = por %p31, %p32
      %p34 = scmp.ne.s32.totalorder %s26, %s29
      %p35 = scmp.eq.s32.totalorder %s16, 0
      %p36 = por %p34, %p35
      %p37 = scmp.ne.s32.totalorder %s26, %s29
      %p38 = scmp.eq.s32.totalorder %s21, 1
      %p39 = por %p37, %p38
      %p40 = scmp.ne.s32.totalorder %s29, %s30
      %p41 = scmp.eq.s32.totalorder %s21, 0
      %p42 = por %p40, %p41
      %p43 = scmp.ne.s32.totalorder %s29, %s30
      %p44 = scmp.eq.s32.totalorder %s22, 1
      %p45 = por %p43, %p44
      %p47 = scmp.ne.s32.totalorder %s30, %s46
      %p48 = scmp.eq.s32.totalorder %s22, 0
      %p49 = por %p47, %p48
      %s51 = sadd.s32 %s50, 1
      %p54 = scmp.eq.s32.totalorder %s16, 1
      %p55 = scmp.ne.s32.totalorder %s50, %s52
      %p56 = scmp.eq.s32.totalorder %s16, 0
      %p57 = por %p55, %p56
      %p58 = scmp.ne.s32.totalorder %s50, %s52
      %p59 = scmp.eq.s32.totalorder %s21, 1
      %p60 = por %p58, %p59
      %p61 = scmp.ne.s32.totalorder %s52, %s53
      %p62 = scmp.eq.s32.totalorder %s21, 0
      %p63 = por %p61, %p62
      %p64 = scmp.ne.s32.totalorder %s52, %s53
      %p65 = scmp.eq.s32.totalorder %s22, 1
      %p66 = por %p64, %p65
      %p68 = scmp.ne.s32.totalorder %s53, %s67
      %p69 = scmp.eq.s32.totalorder %s22, 0
      %p70 = por %p68, %p69
      %s72 = sadd.s32 %s71, 1
      %p75 = scmp.eq.s32.totalorder %s16, 1
      %p76 = scmp.ne.s32.totalorder %s71, %s73
      %p77 = scmp.eq.s32.totalorder %s16, 0
      %p78 = por %p76, %p77
      %p79 = scmp.ne.s32.totalorder %s71, %s73
      %p80 = scmp.eq.s32.totalorder %s21, 1
      %p81 = por %p79, %p80
      %p82 = scmp.ne.s32.totalorder %s73, %s74
      %p83 = scmp.eq.s32.totalorder %s21, 0
      %p84 = por %p82, %p83
      %p85 = scmp.ne.s32.totalorder %s73, %s74
      %p86 = scmp.eq.s32.totalorder %s22, 1
      %p87 = por %p85, %p86
      %p89 = scmp.ne.s32.totalorder %s74, %s88
      %p90 = scmp.eq.s32.totalorder %s22, 0
      %p91 = por %p89, %p90
      %s93 = sadd.s32 %s92, 1
      %p96 = scmp.eq.s32.totalorder %s16, 1
      %p97 = scmp.ne.s32.totalorder %s92, %s94
      %p98 = scmp.eq.s32.totalorder %s16, 0
      %p99 = por %p97, %p98
      %p100 = scmp.ne.s32.totalorder %s92, %s94
      %p101 = scmp.eq.s32.totalorder %s21, 1
      %p102 = por %p100, %p101
      %p103 = scmp.ne.s32.totalorder %s94, %s95
      %p104 = scmp.eq.s32.totalorder %s21, 0
      %p105 = por %p103, %p104
      %p106 = scmp.ne.s32.totalorder %s94, %s95
      %p107 = scmp.eq.s32.totalorder %s22, 1
      %p108 = por %p106, %p107
      %p110 = scmp.ne.s32.totalorder %s95, %s109
      %p111 = scmp.eq.s32.totalorder %s22, 0
      %p112 = por %p110, %p111
      %s114 = sadd.s32 %s113, 1
      %p117 = scmp.eq.s32.totalorder %s16, 1
      %p118 = scmp.ne.s32.totalorder %s113, %s115
      %p119 = scmp.eq.s32.totalorder %s16, 0
      %p120 = por %p118, %p119
      %p121 = scmp.ne.s32.totalorder %s113, %s115
      %p122 = scmp.eq.s32.totalorder %s21, 1
      %p123 = por %p121, %p122
      %p124 = scmp.ne.s32.totalorder %s115, %s116
      %p125 = scmp.eq.s32.totalorder %s21, 0
      %p126 = por %p124, %p125
      %p127 = scmp.ne.s32.totalorder %s115, %s116
      %p128 = scmp.eq.s32.totalorder %s22, 1
      %p129 = por %p127, %p128
      %p131 = scmp.ne.s32.totalorder %s116, %s130
      %p132 = scmp.eq.s32.totalorder %s22, 0
      %p133 = por %p131, %p132
      %s135 = sadd.s32 %s134, 1
      %p138 = scmp.eq.s32.totalorder %s16, 1
      %p139 = scmp.ne.s32.totalorder %s134, %s136
      %p140 = scmp.eq.s32.totalorder %s16, 0
      %p141 = por %p139, %p140
      %p142 = scmp.ne.s32.totalorder %s134, %s136
      %p143 = scmp.eq.s32.totalorder %s21, 1
      %p144 = por %p142, %p143
      %p145 = scmp.ne.s32.totalorder %s136, %s137
      %p146 = scmp.eq.s32.totalorder %s21, 0
      %p147 = por %p145, %p146
      %p148 = scmp.ne.s32.totalorder %s136, %s137
      %p149 = scmp.eq.s32.totalorder %s22, 1
      %p150 = por %p148, %p149
      %p152 = scmp.ne.s32.totalorder %s137, %s151
      %p153 = scmp.eq.s32.totalorder %s22, 0
      %p154 = por %p152, %p153
      %s156 = sadd.s32 %s155, 1
      %p159 = scmp.eq.s32.totalorder %s16, 1
      %p160 = scmp.ne.s32.totalorder %s155, %s157
      %p161 = scmp.eq.s32.totalorder %s16, 0
      %p162 = por %p160, %p161
      %p163 = scmp.ne.s32.totalorder %s155, %s157
      %p164 = scmp.eq.s32.totalorder %s21, 1
      %p165 = por %p163, %p164
      %p166 = scmp.ne.s32.totalorder %s157, %s158
      %p167 = scmp.eq.s32.totalorder %s21, 0
      %p168 = por %p166, %p167
      %p169 = scmp.ne.s32.totalorder %s157, %s158
      %p170 = scmp.eq.s32.totalorder %s22, 1
      %p171 = por %p169, %p170
      %p173 = scmp.ne.s32.totalorder %s158, %s172
      %p174 = scmp.eq.s32.totalorder %s22, 0
      %p175 = por %p173, %p174
      %s176 = ssub.s32 %s16, %s23
      %p177 = scmp.eq.s32.totalorder %s176, 0
      %s179 = sadd.s32 %s178, 1
      %s180 = scalar_select %p177, %s178, %s179
      %p183 = pneg %p177
      %p184 = scmp.eq.s32.totalorder %s16, 1
      %p185 = por %p183, %p184
      %p186 = scmp.ne.s32.totalorder %s178, %s181
      %p187 = scmp.eq.s32.totalorder %s16, 0
      %p188 = por %p186, %p187
      %p189 = scmp.ne.s32.totalorder %s178, %s181
      %p190 = scmp.eq.s32.totalorder %s21, 1
      %p191 = por %p189, %p190
      %p192 = scmp.ne.s32.totalorder %s181, %s182
      %p193 = scmp.eq.s32.totalorder %s21, 0
      %p194 = por %p192, %p193
      %p195 = scmp.ne.s32.totalorder %s181, %s182
      %p196 = scmp.eq.s32.totalorder %s22, 1
      %p197 = por %p195, %p196
      %p199 = scmp.ne.s32.totalorder %s182, %s198
      %p200 = scmp.eq.s32.totalorder %s22, 0
      %p201 = por %p199, %p200
      %p202 = scmp.le.s32.totalorder 1, %s16
      %p203 = scmp.lt.s32.totalorder %s16, 3
      %p204 = pnand %p202, %p203
      %p205 = pneg %p204
      // Predicated region
      $region9: #{tpu_custom_call.1} parent=5 // pred_check
        _
      $region10: #{tpu_custom_call.1} parent=5 // pred_check_branch
        %207 = sbr.rel (%p204) target = $region12
      $region11: #{tpu_custom_call.1} parent=5 // pred_region
        %s208 = ssub.s32 %s16, 1
        // Predicated region
        $region13: #{tpu_custom_call.1} parent=11 // pred_check
          %p209 = pneg %p63
        $region14: #{tpu_custom_call.1} parent=11 // pred_check_branch
          %211 = sbr.rel (%p209) target = $region16
        $region15: #{tpu_custom_call.1} parent=11 // pred_region
          _
        $region16: #{tpu_custom_call.1} parent=11 // pred_fallthru
          _
        // Predicated region
        $region17: #{tpu_custom_call.1} parent=11 // pred_check
          %p212 = pneg %p84
        $region18: #{tpu_custom_call.1} parent=11 // pred_check_branch
          %214 = sbr.rel (%p212) target = $region20
        $region19: #{tpu_custom_call.1} parent=11 // pred_region
          _
        $region20: #{tpu_custom_call.1} parent=11 // pred_fallthru
          _
        // Predicated region
        $region21: #{tpu_custom_call.1} parent=11 // pred_check
          %p215 = pneg %p105
        $region22: #{tpu_custom_call.1} parent=11 // pred_check_branch
          %217 = sbr.rel (%p215) target = $region24
        $region23: #{tpu_custom_call.1} parent=11 // pred_region
          _
        $region24: #{tpu_custom_call.1} parent=11 // pred_fallthru
          _
        // Predicated region
        $region25: #{tpu_custom_call.1} parent=11 // pred_check
          %p218 = pneg %p126
        $region26: #{tpu_custom_call.1} parent=11 // pred_check_branch
          %220 = sbr.rel (%p218) target = $region28
        $region27: #{tpu_custom_call.1} parent=11 // pred_region
          _
        $region28: #{tpu_custom_call.1} parent=11 // pred_fallthru
          _
        // Predicated region
        $region29: #{tpu_custom_call.1} parent=11 // pred_check
          %p221 = pneg %p147
        $region30: #{tpu_custom_call.1} parent=11 // pred_check_branch
          %223 = sbr.rel (%p221) target = $region32
        $region31: #{tpu_custom_call.1} parent=11 // pred_region
          _
        $region32: #{tpu_custom_call.1} parent=11 // pred_fallthru
          _
        // Predicated region
        $region33: #{tpu_custom_call.1} parent=11 // pred_check
          %p224 = pneg %p168
        $region34: #{tpu_custom_call.1} parent=11 // pred_check_branch
          %226 = sbr.rel (%p224) target = $region36
        $region35: #{tpu_custom_call.1} parent=11 // pred_region
          _
        $region36: #{tpu_custom_call.1} parent=11 // pred_fallthru
          _
      $region12: #{tpu_custom_call.1} parent=5 // pred_fallthru
        _
      %p227 = scmp.lt.s32.totalorder %s16, 2
      // Predicated region
      $region37: #{tpu_custom_call.1} parent=5 // pred_check
        %p228 = pneg %p227
      $region38: #{tpu_custom_call.1} parent=5 // pred_check_branch
        %230 = sbr.rel (%p228) target = $region40
      $region39: #{tpu_custom_call.1} parent=5 // pred_region
        // Predicated region
        $region41: #{tpu_custom_call.1} parent=39 // pred_check
          %p231 = pneg %p36
        $region42: #{tpu_custom_call.1} parent=39 // pred_check_branch
          %233 = sbr.rel (%p231) target = $region44
        $region43: #{tpu_custom_call.1} parent=39 // pred_region
          %s234 = smul.u32 16, %s16
          %p235 = scmp.lt.s32.totalorder %s234, 31
          %s236 = scalar_select %p235, %s234, 31
          %s237 = smul.addr %s236, 4
          %s238 = scalar_lea.vmem %s0, %s237
          %s239 = smul.u32 16, %s16
        $region44: #{tpu_custom_call.1} parent=39 // pred_fallthru
          _
      $region40: #{tpu_custom_call.1} parent=5 // pred_fallthru
        _
      %p240 = scmp.le.s32.totalorder 1, %s16
      %p241 = scmp.lt.s32.totalorder %s16, 3
      %p242 = pnand %p240, %p241
      %p243 = pneg %p242
      // Predicated region
      $region45: #{tpu_custom_call.1} parent=5 // pred_check
        _
      $region46: #{tpu_custom_call.1} parent=5 // pred_check_branch
        %245 = sbr.rel (%p242) target = $region48
      $region47: #{tpu_custom_call.1} parent=5 // pred_region
        %s246 = ssub.s32 %s16, 1
        %s247 = smul.u32 16, %s21
        %p248 = scmp.lt.s32.totalorder %s247, 31
        %s249 = scalar_select %p248, %s247, 31
        %s250 = smul.addr %s249, 4
        %s251 = scalar_lea.vmem %s0, %s250
        %p252 = pneg %p42
        %p253 = pneg %p39
        %p254 = pneg %p63
        %p255 = pneg %p60
        %p256 = pneg %p84
        %p257 = pneg %p81
        %p258 = pneg %p105
        %p259 = pneg %p102
        %p260 = pneg %p126
        %p261 = pneg %p123
        %p262 = pneg %p147
        %p263 = pneg %p144
        %p264 = pneg %p168
        %p265 = pneg %p165
        %p266 = pneg %p194
        %p267 = pneg %p191
        %s268 = sand.u32 %s181, 1
        %s269 = scalar_lea.sflag [#allocation3], %s268
        %s270 = sand.u32 %s181, 1
        %s271 = smul.addr %s270, 128
        %s272 = scalar_lea.vmem [#allocation2], %s271
        %s273 = smul.u32 16, %s21
        %p274 = scmp.lt.s32.totalorder %s273, 31
        %s275 = scalar_select %p274, %s273, 31
        %s276 = smul.addr %s275, 4
        %s277 = scalar_lea.vmem %s0, %s276
        %s278 = smul.u32 16, %s21
        %s279 = smul.u32 16, %s21
        %v281 = vld [vmem:[%s277] sm:$0xf]
        %v282 = vld [vmem:[%s277 + $0x4] sm:$0xf]
        %v283 = vld [vmem:[%s277 + $0x8] sm:$0xf]
        %v284 = vld [vmem:[%s277 + $0xc] sm:$0xf]
        %v285 = vld [vmem:[%s277 + $0x10] sm:$0xf]
        %v286 = vld [vmem:[%s277 + $0x14] sm:$0xf]
        %v287 = vld [vmem:[%s277 + $0x18] sm:$0xf]
        %v288 = vld [vmem:[%s277 + $0x1c] sm:$0xf]
        %v289 = vld [vmem:[%s277 + $0x20] sm:$0xf]
        %v290 = vld [vmem:[%s277 + $0x24] sm:$0xf]
        %v291 = vld [vmem:[%s277 + $0x28] sm:$0xf]
        %v292 = vld [vmem:[%s277 + $0x2c] sm:$0xf]
        %v293 = vld [vmem:[%s277 + $0x30] sm:$0xf]
        %v294 = vld [vmem:[%s277 + $0x34] sm:$0xf]
        %v295 = vld [vmem:[%s277 + $0x38] sm:$0xf]
        %v296 = vld [vmem:[%s277 + $0x3c] sm:$0xf]
        %v297 = vld [vmem:[%s1] sm:$0xff]
        %v298 = vld [vmem:[%s1 + $0x8] sm:$0xff]
        %v299 = vld [vmem:[%s1 + $0x10] sm:$0xff]
        %v300 = vld [vmem:[%s1 + $0x18] sm:$0xff]
        %v301 = vld [vmem:[%s2] sm:$0x3]
        %v303 = vlaneseq
        %v304 = vshrl.u32 %v303, 7
        %v305 = vsub.s32 0, %v304
        %v306 = vrot.slane %v301, %v305
        %v307 = vlaneseq
        %v308 = vshrl.u32 %v307, 7
        %v309 = vsub.s32 1, %v308
        %v310 = vrot.slane %v301, %v309
        %v329 = vunpack.c.l.b16 %v281
        %v330 = vunpack.c.l.b16 %v282
        %v331 = vunpack.c.l.b16 %v283
        %v332 = vunpack.c.l.b16 %v284
        %v333 = vunpack.c.l.b16 %v285
        %v334 = vunpack.c.l.b16 %v286
        %v335 = vunpack.c.l.b16 %v287
        %v336 = vunpack.c.l.b16 %v288
        %v337 = vunpack.c.l.b16 %v289
        %v338 = vunpack.c.l.b16 %v290
        %v339 = vunpack.c.l.b16 %v291
        %v340 = vunpack.c.l.b16 %v292
        %v341 = vunpack.c.l.b16 %v293
        %v342 = vunpack.c.l.b16 %v294
        %v343 = vunpack.c.l.b16 %v295
        %v344 = vunpack.c.l.b16 %v296
        %v345 = vpack.c.b16 %v330, %v329
        %v346 = vpack.c.b16 %v332, %v331
        %v347 = vpack.c.b16 %v334, %v333
        %v348 = vpack.c.b16 %v336, %v335
        %v349 = vpack.c.b16 %v338, %v337
        %v350 = vpack.c.b16 %v340, %v339
        %v351 = vpack.c.b16 %v342, %v341
        %v352 = vpack.c.b16 %v344, %v343
        %v357 = vunpack.c.l.b16 %v297
        %v358 = vunpack.c.h.b16 %v297
        %v359 = vunpack.c.l.b16 %v298
        %v360 = vunpack.c.h.b16 %v298
        %v361 = vunpack.c.l.b16 %v299
        %v362 = vunpack.c.h.b16 %v299
        %v363 = vunpack.c.l.b16 %v300
        %v364 = vunpack.c.h.b16 %v300
        %v365 = vpack.c.b16 %v359, %v357
        %v366 = vpack.c.b16 %v360, %v358
        %v367 = vpack.c.b16 %v363, %v361
        %v368 = vpack.c.b16 %v364, %v362
        %vm373 = vcmask 261120
        %v375 = vsel %vm373, %v345, 0
        %v378 = vsel %vm373, %v346, 0
        %v381 = vsel %vm373, %v347, 0
        %v384 = vsel %vm373, %v348, 0
        %v387 = vsel %vm373, %v349, 0
        %v390 = vsel %vm373, %v350, 0
        %v393 = vsel %vm373, %v351, 0
        %v396 = vsel %vm373, %v352, 0
        %398 = vmatprep.subr.bf16.mxu0 %v366
        %399 = vmatpush1.bf16.msra.mxu0 %v365
        %400 = vmatprep.subr.bf16.mxu0 %v368
        %401 = vmatpush1.bf16.msra.mxu0 %v367
        %402 = vmatprep.subr.bf16.mxu0 0
        %403 = vmatpush1.bf16.msra.mxu0 0
        %404 = vmatprep.subr.bf16.mxu0 0
        %405 = vmatpush1.bf16.msra.mxu0 0
        %406 = vmatprep.subr.bf16.mxu0 0
        %407 = vmatpush1.bf16.msra.mxu0 0
        %408 = vmatprep.subr.bf16.mxu0 0
        %409 = vmatpush1.bf16.msra.mxu0 0
        %410 = vmatprep.subr.bf16.mxu0 0
        %411 = vmatpush1.bf16.msra.mxu0 0
        %412 = vmatprep.subr.bf16.mxu0 0
        %413 = vmatpush1.bf16.msra.mxu0 0
        %414 = vmatprep.subr.bf16.mxu0 0
        %415 = vmatpush1.bf16.msra.mxu0 0
        %416 = vmatprep.subr.bf16.mxu0 0
        %417 = vmatpush1.bf16.msra.mxu0 0
        %418 = vmatprep.subr.bf16.mxu0 0
        %419 = vmatpush1.bf16.msra.mxu0 0
        %420 = vmatprep.subr.bf16.mxu0 0
        %421 = vmatpush1.bf16.msra.mxu0 0
        %422 = vmatprep.subr.bf16.mxu0 0
        %423 = vmatpush1.bf16.msra.mxu0 0
        %424 = vmatprep.subr.bf16.mxu0 0
        %425 = vmatpush1.bf16.msra.mxu0 0
        %426 = vmatprep.subr.bf16.mxu0 0
        %427 = vmatpush1.bf16.msra.mxu0 0
        %428 = vmatprep.subr.bf16.mxu0 0
        %429 = vmatpush1.bf16.msra.mxu0 0
        %430 = vmatprep.mubr.bf16.mxu0 0
        %431 = vmatmul.mubr.bf16.gmra.mrb[0].mxu0 %v375
        %v432 = vpop.f32.mrb[0].mxu0
        %v433 = vadd.f32 %v306, %v432
        %v434 = vpop.f32.mrb[0].mxu0
        %v435 = vadd.f32 %v310, %v434
        %v436 = vpop.f32.mrb[0].mxu0
        %v437 = vadd.f32 %v306, %v436
        %v438 = vpop.f32.mrb[0].mxu0
        %v439 = vadd.f32 %v310, %v438
        %440 = vmatprep.mubr.bf16.mxu0 0
        %441 = vmatmul.mubr.bf16.gmra.mrb[0].mxu0 %v378
        %v442 = vpop.f32.mrb[0].mxu0
        %v443 = vadd.f32 %v306, %v442
        %v444 = vpop.f32.mrb[0].mxu0
        %v445 = vadd.f32 %v310, %v444
        %v446 = vpop.f32.mrb[0].mxu0
        %v447 = vadd.f32 %v306, %v446
        %v448 = vpop.f32.mrb[0].mxu0
        %v449 = vadd.f32 %v310, %v448
        %450 = vmatprep.mubr.bf16.mxu0 0
        %451 = vmatmul.mubr.bf16.gmra.mrb[0].mxu0 %v381
        %v452 = vpop.f32.mrb[0].mxu0
        %v453 = vadd.f32 %v306, %v452
        %v454 = vpop.f32.mrb[0].mxu0
        %v455 = vadd.f32 %v310, %v454
        %v456 = vpop.f32.mrb[0].mxu0
        %v457 = vadd.f32 %v306, %v456
        %v458 = vpop.f32.mrb[0].mxu0
        %v459 = vadd.f32 %v310, %v458
        %460 = vmatprep.mubr.bf16.mxu0 0
        %461 = vmatmul.mubr.bf16.gmra.mrb[0].mxu0 %v384
        %v462 = vpop.f32.mrb[0].mxu0
        %v463 = vadd.f32 %v306, %v462
        %v464 = vpop.f32.mrb[0].mxu0
        %v465 = vadd.f32 %v310, %v464
        %v466 = vpop.f32.mrb[0].mxu0
        %v467 = vadd.f32 %v306, %v466
        %v468 = vpop.f32.mrb[0].mxu0
        %v469 = vadd.f32 %v310, %v468
        %470 = vmatprep.mubr.bf16.mxu0 0
        %471 = vmatmul.mubr.bf16.gmra.mrb[0].mxu0 %v387
        %v472 = vpop.f32.mrb[0].mxu0
        %v473 = vadd.f32 %v306, %v472
        %v474 = vpop.f32.mrb[0].mxu0
        %v475 = vadd.f32 %v310, %v474
        %v476 = vpop.f32.mrb[0].mxu0
        %v477 = vadd.f32 %v306, %v476
        %v478 = vpop.f32.mrb[0].mxu0
        %v479 = vadd.f32 %v310, %v478
        %480 = vmatprep.mubr.bf16.mxu0 0
        %481 = vmatmul.mubr.bf16.gmra.mrb[0].mxu0 %v390
        %v482 = vpop.f32.mrb[0].mxu0
        %v483 = vadd.f32 %v306, %v482
        %v484 = vpop.f32.mrb[0].mxu0
        %v485 = vadd.f32 %v310, %v484
        %v486 = vpop.f32.mrb[0].mxu0
        %v487 = vadd.f32 %v306, %v486
        %v488 = vpop.f32.mrb[0].mxu0
        %v489 = vadd.f32 %v310, %v488
        %490 = vmatprep.mubr.bf16.mxu0 0
        %491 = vmatmul.mubr.bf16.gmra.mrb[0].mxu0 %v393
        %v492 = vpop.f32.mrb[0].mxu0
        %v493 = vadd.f32 %v306, %v492
        %v494 = vpop.f32.mrb[0].mxu0
        %v495 = vadd.f32 %v310, %v494
        %v496 = vpop.f32.mrb[0].mxu0
        %v497 = vadd.f32 %v306, %v496
        %v498 = vpop.f32.mrb[0].mxu0
        %v499 = vadd.f32 %v310, %v498
        %500 = vmatprep.mubr.bf16.mxu0 0
        %501 = vmatmul.mubr.bf16.gmra.mrb[0].mxu0 %v396
        %v502 = vpop.f32.mrb[0].mxu0
        %v503 = vadd.f32 %v306, %v502
        %v504 = vpop.f32.mrb[0].mxu0
        %v505 = vadd.f32 %v310, %v504
        %v506 = vpop.f32.mrb[0].mxu0
        %v507 = vadd.f32 %v306, %v506
        %v508 = vpop.f32.mrb[0].mxu0
        %v509 = vadd.f32 %v310, %v508
        %510 = vdwg.mxu0
        %v511 = vmax.f32 %v433, 0.0
        %v512 = vmax.f32 %v437, 0.0
        %v513 = vmax.f32 %v443, 0.0
        %v514 = vmax.f32 %v447, 0.0
        %v515 = vmax.f32 %v453, 0.0
        %v516 = vmax.f32 %v457, 0.0
        %v517 = vmax.f32 %v463, 0.0
        %v518 = vmax.f32 %v467, 0.0
        %v519 = vmax.f32 %v473, 0.0
        %v520 = vmax.f32 %v477, 0.0
        %v521 = vmax.f32 %v483, 0.0
        %v522 = vmax.f32 %v487, 0.0
        %v523 = vmax.f32 %v493, 0.0
        %v524 = vmax.f32 %v497, 0.0
        %v525 = vmax.f32 %v503, 0.0
        %v526 = vmax.f32 %v507, 0.0
        %v527 = vpack.c.bf16 %v512, %v511
        %v528 = vpack.c.bf16 %v514, %v513
        %v529 = vpack.c.bf16 %v516, %v515
        %v530 = vpack.c.bf16 %v518, %v517
        %v531 = vpack.c.bf16 %v520, %v519
        %v532 = vpack.c.bf16 %v522, %v521
        %v533 = vpack.c.bf16 %v524, %v523
        %v534 = vpack.c.bf16 %v526, %v525
        %v535 = vld [vmem:[%s3] sm:$0xf]
        %v536 = vld [vmem:[%s3 + $0x4] sm:$0xf]
        %v537 = vld [vmem:[%s3 + $0x8] sm:$0xf]
        %v538 = vld [vmem:[%s3 + $0xc] sm:$0xf]
        %v539 = vld [vmem:[%s3 + $0x10] sm:$0xf]
        %v540 = vld [vmem:[%s3 + $0x14] sm:$0xf]
        %v541 = vld [vmem:[%s3 + $0x18] sm:$0xf]
        %v542 = vld [vmem:[%s3 + $0x1c] sm:$0xf]
        %v543 = vld [vmem:[%s3 + $0x20] sm:$0xf]
        %v544 = vld [vmem:[%s3 + $0x24] sm:$0xf]
        %v545 = vld [vmem:[%s3 + $0x28] sm:$0xf]
        %v546 = vld [vmem:[%s3 + $0x2c] sm:$0xf]
        %v547 = vld [vmem:[%s3 + $0x30] sm:$0xf]
        %v548 = vld [vmem:[%s3 + $0x34] sm:$0xf]
        %v549 = vld [vmem:[%s3 + $0x38] sm:$0xf]
        %v550 = vld [vmem:[%s3 + $0x3c] sm:$0xf]
        %v551 = vld [vmem:[%s4] sm:$0x1]
        %v553 = vlaneseq
        %v554 = vshrl.u32 %v553, 7
        %v555 = vsub.s32 0, %v554
        %v556 = vrot.slane %v551, %v555
        %v574 = vunpack.c.l.b16 %v535
        %v575 = vunpack.c.l.b16 %v536
        %v576 = vunpack.c.l.b16 %v537
        %v577 = vunpack.c.l.b16 %v538
        %v578 = vunpack.c.l.b16 %v539
        %v579 = vunpack.c.l.b16 %v540
        %v580 = vunpack.c.l.b16 %v541
        %v581 = vunpack.c.l.b16 %v542
        %v582 = vunpack.c.l.b16 %v543
        %v583 = vunpack.c.l.b16 %v544
        %v584 = vunpack.c.l.b16 %v545
        %v585 = vunpack.c.l.b16 %v546
        %v586 = vunpack.c.l.b16 %v547
        %v587 = vunpack.c.l.b16 %v548
        %v588 = vunpack.c.l.b16 %v549
        %v589 = vunpack.c.l.b16 %v550
        %v590 = vpack.c.b16 %v575, %v574
        %v591 = vpack.c.b16 %v577, %v576
        %v592 = vpack.c.b16 %v579, %v578
        %v593 = vpack.c.b16 %v581, %v580
        %v594 = vpack.c.b16 %v583, %v582
        %v595 = vpack.c.b16 %v585, %v584
        %v596 = vpack.c.b16 %v587, %v586
        %v597 = vpack.c.b16 %v589, %v588
        %606 = vmatprep.subr.bf16.mxu0 0
        %607 = vmatpush1.bf16.msra.mxu0 %v590
        %608 = vmatprep.subr.bf16.mxu0 0
        %609 = vmatpush1.bf16.msra.mxu0 %v591
        %610 = vmatprep.subr.bf16.mxu0 0
        %611 = vmatpush1.bf16.msra.mxu0 %v592
        %612 = vmatprep.subr.bf16.mxu0 0
        %613 = vmatpush1.bf16.msra.mxu0 %v593
        %614 = vmatprep.subr.bf16.mxu0 0
        %615 = vmatpush1.bf16.msra.mxu0 %v594
        %616 = vmatprep.subr.bf16.mxu0 0
        %617 = vmatpush1.bf16.msra.mxu0 %v595
        %618 = vmatprep.subr.bf16.mxu0 0
        %619 = vmatpush1.bf16.msra.mxu0 %v596
        %620 = vmatprep.subr.bf16.mxu0 0
        %621 = vmatpush1.bf16.msra.mxu0 %v597
        %622 = vmatprep.subr.bf16.mxu0 0
        %623 = vmatpush1.bf16.msra.mxu0 0
        %624 = vmatprep.subr.bf16.mxu0 0
        %625 = vmatpush1.bf16.msra.mxu0 0
        %626 = vmatprep.subr.bf16.mxu0 0
        %627 = vmatpush1.bf16.msra.mxu0 0
        %628 = vmatprep.subr.bf16.mxu0 0
        %629 = vmatpush1.bf16.msra.mxu0 0
        %630 = vmatprep.subr.bf16.mxu0 0
        %631 = vmatpush1.bf16.msra.mxu0 0
        %632 = vmatprep.subr.bf16.mxu0 0
        %633 = vmatpush1.bf16.msra.mxu0 0
        %634 = vmatprep.subr.bf16.mxu0 0
        %635 = vmatpush1.bf16.msra.mxu0 0
        %636 = vmatprep.subr.bf16.mxu0 0
        %637 = vmatpush1.bf16.msra.mxu0 0
        %638 = vmatprep.mubr.bf16.mxu0 0
        %639 = vmatmul.mubr.bf16.gmra.mrb[0].mxu0 %v527
        %v640 = vpop.f32.mrb[0].mxu0
        %v641 = vadd.f32 %v556, %v640
        %v642 = vpop.f32.mrb[0].mxu0
        %v643 = vpop.f32.mrb[0].mxu0
        %v644 = vadd.f32 %v556, %v643
        %v645 = vpop.f32.mrb[0].mxu0
        %646 = vmatprep.mubr.bf16.mxu0 0
        %647 = vmatmul.mubr.bf16.gmra.mrb[0].mxu0 %v528
        %v648 = vpop.f32.mrb[0].mxu0
        %v649 = vadd.f32 %v556, %v648
        %v650 = vpop.f32.mrb[0].mxu0
        %v651 = vpop.f32.mrb[0].mxu0
        %v652 = vadd.f32 %v556, %v651
        %v653 = vpop.f32.mrb[0].mxu0
        %654 = vmatprep.mubr.bf16.mxu0 0
        %655 = vmatmul.mubr.bf16.gmra.mrb[0].mxu0 %v529
        %v656 = vpop.f32.mrb[0].mxu0
        %v657 = vadd.f32 %v556, %v656
        %v658 = vpop.f32.mrb[0].mxu0
        %v659 = vpop.f32.mrb[0].mxu0
        %v660 = vadd.f32 %v556, %v659
        %v661 = vpop.f32.mrb[0].mxu0
        %662 = vmatprep.mubr.bf16.mxu0 0
        %663 = vmatmul.mubr.bf16.gmra.mrb[0].mxu0 %v530
        %v664 = vpop.f32.mrb[0].mxu0
        %v665 = vadd.f32 %v556, %v664
        %v666 = vpop.f32.mrb[0].mxu0
        %v667 = vpop.f32.mrb[0].mxu0
        %v668 = vadd.f32 %v556, %v667
        %v669 = vpop.f32.mrb[0].mxu0
        %670 = vmatprep.mubr.bf16.mxu0 0
        %671 = vmatmul.mubr.bf16.gmra.mrb[0].mxu0 %v531
        %v672 = vpop.f32.mrb[0].mxu0
        %v673 = vadd.f32 %v556, %v672
        %v674 = vpop.f32.mrb[0].mxu0
        %v675 = vpop.f32.mrb[0].mxu0
        %v676 = vadd.f32 %v556, %v675
        %v677 = vpop.f32.mrb[0].mxu0
        %678 = vmatprep.mubr.bf16.mxu0 0
        %679 = vmatmul.mubr.bf16.gmra.mrb[0].mxu0 %v532
        %v680 = vpop.f32.mrb[0].mxu0
        %v681 = vadd.f32 %v556, %v680
        %v682 = vpop.f32.mrb[0].mxu0
        %v683 = vpop.f32.mrb[0].mxu0
        %v684 = vadd.f32 %v556, %v683
        %v685 = vpop.f32.mrb[0].mxu0
        %686 = vmatprep.mubr.bf16.mxu0 0
        %687 = vmatmul.mubr.bf16.gmra.mrb[0].mxu0 %v533
        %v688 = vpop.f32.mrb[0].mxu0
        %v689 = vadd.f32 %v556, %v688
        %v690 = vpop.f32.mrb[0].mxu0
        %v691 = vpop.f32.mrb[0].mxu0
        %v692 = vadd.f32 %v556, %v691
        %v693 = vpop.f32.mrb[0].mxu0
        %694 = vmatprep.mubr.bf16.mxu0 0
        %695 = vmatmul.mubr.bf16.gmra.mrb[0].mxu0 %v534
        %v696 = vpop.f32.mrb[0].mxu0
        %v697 = vadd.f32 %v556, %v696
        %v698 = vpop.f32.mrb[0].mxu0
        %v699 = vpop.f32.mrb[0].mxu0
        %v700 = vadd.f32 %v556, %v699
        %v701 = vpop.f32.mrb[0].mxu0
        %702 = vdwg.mxu0
        %v703 = vadd.f32 %v641, %v435
        %v704 = vadd.f32 %v644, %v439
        %v705 = vadd.f32 %v649, %v445
        %v706 = vadd.f32 %v652, %v449
        %v707 = vadd.f32 %v657, %v455
        %v708 = vadd.f32 %v660, %v459
        %v709 = vadd.f32 %v665, %v465
        %v710 = vadd.f32 %v668, %v469
        %v711 = vadd.f32 %v673, %v475
        %v712 = vadd.f32 %v676, %v479
        %v713 = vadd.f32 %v681, %v485
        %v714 = vadd.f32 %v684, %v489
        %v715 = vadd.f32 %v689, %v495
        %v716 = vadd.f32 %v692, %v499
        %v717 = vadd.f32 %v697, %v505
        %v718 = vadd.f32 %v700, %v509
        %v719 = vlaneseq
        %v720 = vand.u32 %v719, 127
        %vm721 = vcmp.lt.s32.totalorder %v720, 16
        %v722 = vsel %vm721, 1, 0
        %v723 = vcvt.s32.f32 %v722
        %v724 = vmul.f32 %v703, %v723
        %v725 = vmul.f32 %v704, %v723
        %v726 = vmul.f32 %v705, %v723
        %v727 = vmul.f32 %v706, %v723
        %v728 = vmul.f32 %v707, %v723
        %v729 = vmul.f32 %v708, %v723
        %v730 = vmul.f32 %v709, %v723
        %v731 = vmul.f32 %v710, %v723
        %v732 = vmul.f32 %v711, %v723
        %v733 = vmul.f32 %v712, %v723
        %v734 = vmul.f32 %v713, %v723
        %v735 = vmul.f32 %v714, %v723
        %v736 = vmul.f32 %v715, %v723
        %v737 = vmul.f32 %v716, %v723
        %v738 = vmul.f32 %v717, %v723
        %v739 = vmul.f32 %v718, %v723
        %740 = vadd.xlane.f32.xlu0 %v724
        %v741 = vpop.xlane.xlu0 %740
        %742 = vadd.xlane.f32.xlu0 %v725
        %v743 = vpop.xlane.xlu0 %742
        %744 = vadd.xlane.f32.xlu0 %v726
        %v745 = vpop.xlane.xlu0 %744
        %746 = vadd.xlane.f32.xlu0 %v727
        %v747 = vpop.xlane.xlu0 %746
        %748 = vadd.xlane.f32.xlu0 %v728
        %v749 = vpop.xlane.xlu0 %748
        %750 = vadd.xlane.f32.xlu0 %v729
        %v751 = vpop.xlane.xlu0 %750
        %752 = vadd.xlane.f32.xlu0 %v730
        %v753 = vpop.xlane.xlu0 %752
        %754 = vadd.xlane.f32.xlu0 %v731
        %v755 = vpop.xlane.xlu0 %754
        %756 = vadd.xlane.f32.xlu0 %v732
        %v757 = vpop.xlane.xlu0 %756
        %758 = vadd.xlane.f32.xlu0 %v733
        %v759 = vpop.xlane.xlu0 %758
        %760 = vadd.xlane.f32.xlu0 %v734
        %v761 = vpop.xlane.xlu0 %760
        %762 = vadd.xlane.f32.xlu0 %v735
        %v763 = vpop.xlane.xlu0 %762
        %764 = vadd.xlane.f32.xlu0 %v736
        %v765 = vpop.xlane.xlu0 %764
        %766 = vadd.xlane.f32.xlu0 %v737
        %v767 = vpop.xlane.xlu0 %766
        %768 = vadd.xlane.f32.xlu0 %v738
        %v769 = vpop.xlane.xlu0 %768
        %770 = vadd.xlane.f32.xlu0 %v739
        %v771 = vpop.xlane.xlu0 %770
        %v772 = vmul.f32 %v741, 0.0625
        %v773 = vmul.f32 %v743, 0.0625
        %v774 = vmul.f32 %v745, 0.0625
        %v775 = vmul.f32 %v747, 0.0625
        %v776 = vmul.f32 %v749, 0.0625
        %v777 = vmul.f32 %v751, 0.0625
        %v778 = vmul.f32 %v753, 0.0625
        %v779 = vmul.f32 %v755, 0.0625
        %v780 = vmul.f32 %v757, 0.0625
        %v781 = vmul.f32 %v759, 0.0625
        %v782 = vmul.f32 %v761, 0.0625
        %v783 = vmul.f32 %v763, 0.0625
        %v784 = vmul.f32 %v765, 0.0625
        %v785 = vmul.f32 %v767, 0.0625
        %v786 = vmul.f32 %v769, 0.0625
        %v787 = vmul.f32 %v771, 0.0625
        %v788 = vsub.f32 %v703, %v772
        %v789 = vsub.f32 %v704, %v773
        %v790 = vsub.f32 %v705, %v774
        %v791 = vsub.f32 %v706, %v775
        %v792 = vsub.f32 %v707, %v776
        %v793 = vsub.f32 %v708, %v777
        %v794 = vsub.f32 %v709, %v778
        %v795 = vsub.f32 %v710, %v779
        %v796 = vsub.f32 %v711, %v780
        %v797 = vsub.f32 %v712, %v781
        %v798 = vsub.f32 %v713, %v782
        %v799 = vsub.f32 %v714, %v783
        %v800 = vsub.f32 %v715, %v784
        %v801 = vsub.f32 %v716, %v785
        %v802 = vsub.f32 %v717, %v786
        %v803 = vsub.f32 %v718, %v787
        %v804 = vmul.f32 %v788, %v723
        %v805 = vmul.f32 %v789, %v723
        %v806 = vmul.f32 %v790, %v723
        %v807 = vmul.f32 %v791, %v723
        %v808 = vmul.f32 %v792, %v723
        %v809 = vmul.f32 %v793, %v723
        %v810 = vmul.f32 %v794, %v723
        %v811 = vmul.f32 %v795, %v723
        %v812 = vmul.f32 %v796, %v723
        %v813 = vmul.f32 %v797, %v723
        %v814 = vmul.f32 %v798, %v723
        %v815 = vmul.f32 %v799, %v723
        %v816 = vmul.f32 %v800, %v723
        %v817 = vmul.f32 %v801, %v723
        %v818 = vmul.f32 %v802, %v723
        %v819 = vmul.f32 %v803, %v723
        %v820 = vmul.f32 %v804, %v804
        %v821 = vmul.f32 %v805, %v805
        %v822 = vmul.f32 %v806, %v806
        %v823 = vmul.f32 %v807, %v807
        %v824 = vmul.f32 %v808, %v808
        %v825 = vmul.f32 %v809, %v809
        %v826 = vmul.f32 %v810, %v810
        %v827 = vmul.f32 %v811, %v811
        %v828 = vmul.f32 %v812, %v812
        %v829 = vmul.f32 %v813, %v813
        %v830 = vmul.f32 %v814, %v814
        %v831 = vmul.f32 %v815, %v815
        %v832 = vmul.f32 %v816, %v816
        %v833 = vmul.f32 %v817, %v817
        %v834 = vmul.f32 %v818, %v818
        %v835 = vmul.f32 %v819, %v819
        %836 = vadd.xlane.f32.xlu0 %v820
        %v837 = vpop.xlane.xlu0 %836
        %838 = vadd.xlane.f32.xlu0 %v821
        %v839 = vpop.xlane.xlu0 %838
        %840 = vadd.xlane.f32.xlu0 %v822
        %v841 = vpop.xlane.xlu0 %840
        %842 = vadd.xlane.f32.xlu0 %v823
        %v843 = vpop.xlane.xlu0 %842
        %844 = vadd.xlane.f32.xlu0 %v824
        %v845 = vpop.xlane.xlu0 %844
        %846 = vadd.xlane.f32.xlu0 %v825
        %v847 = vpop.xlane.xlu0 %846
        %848 = vadd.xlane.f32.xlu0 %v826
        %v849 = vpop.xlane.xlu0 %848
        %850 = vadd.xlane.f32.xlu0 %v827
        %v851 = vpop.xlane.xlu0 %850
        %852 = vadd.xlane.f32.xlu0 %v828
        %v853 = vpop.xlane.xlu0 %852
        %854 = vadd.xlane.f32.xlu0 %v829
        %v855 = vpop.xlane.xlu0 %854
        %856 = vadd.xlane.f32.xlu0 %v830
        %v857 = vpop.xlane.xlu0 %856
        %858 = vadd.xlane.f32.xlu0 %v831
        %v859 = vpop.xlane.xlu0 %858
        %860 = vadd.xlane.f32.xlu0 %v832
        %v861 = vpop.xlane.xlu0 %860
        %862 = vadd.xlane.f32.xlu0 %v833
        %v863 = vpop.xlane.xlu0 %862
        %864 = vadd.xlane.f32.xlu0 %v834
        %v865 = vpop.xlane.xlu0 %864
        %866 = vadd.xlane.f32.xlu0 %v835
        %v867 = vpop.xlane.xlu0 %866
        %v868 = vmul.f32 %v837, 0.0625
        %v869 = vmul.f32 %v839, 0.0625
        %v870 = vmul.f32 %v841, 0.0625
        %v871 = vmul.f32 %v843, 0.0625
        %v872 = vmul.f32 %v845, 0.0625
        %v873 = vmul.f32 %v847, 0.0625
        %v874 = vmul.f32 %v849, 0.0625
        %v875 = vmul.f32 %v851, 0.0625
        %v876 = vmul.f32 %v853, 0.0625
        %v877 = vmul.f32 %v855, 0.0625
        %v878 = vmul.f32 %v857, 0.0625
        %v879 = vmul.f32 %v859, 0.0625
        %v880 = vmul.f32 %v861, 0.0625
        %v881 = vmul.f32 %v863, 0.0625
        %v882 = vmul.f32 %v865, 0.0625
        %v883 = vmul.f32 %v867, 0.0625
        %v884 = vadd.f32 %v868, 1e-05
        %v885 = vadd.f32 %v869, 1e-05
        %v886 = vadd.f32 %v870, 1e-05
        %v887 = vadd.f32 %v871, 1e-05
        %v888 = vadd.f32 %v872, 1e-05
        %v889 = vadd.f32 %v873, 1e-05
        %v890 = vadd.f32 %v874, 1e-05
        %v891 = vadd.f32 %v875, 1e-05
        %v892 = vadd.f32 %v876, 1e-05
        %v893 = vadd.f32 %v877, 1e-05
        %v894 = vadd.f32 %v878, 1e-05
        %v895 = vadd.f32 %v879, 1e-05
        %v896 = vadd.f32 %v880, 1e-05
        %v897 = vadd.f32 %v881, 1e-05
        %v898 = vadd.f32 %v882, 1e-05
        %v899 = vadd.f32 %v883, 1e-05
        %v900 = vrsqrt.pop %v884
        %v901 = vrsqrt.pop %v885
        %v902 = vrsqrt.pop %v886
        %v903 = vrsqrt.pop %v887
        %v904 = vrsqrt.pop %v888
        %v905 = vrsqrt.pop %v889
        %v906 = vrsqrt.pop %v890
        %v907 = vrsqrt.pop %v891
        %v908 = vrsqrt.pop %v892
        %v909 = vrsqrt.pop %v893
        %v910 = vrsqrt.pop %v894
        %v911 = vrsqrt.pop %v895
        %v912 = vrsqrt.pop %v896
        %v913 = vrsqrt.pop %v897
        %v914 = vrsqrt.pop %v898
        %v915 = vrsqrt.pop %v899
        %v916 = vmul.f32 %v788, %v900
        %v917 = vmul.f32 %v789, %v901
        %v918 = vmul.f32 %v790, %v902
        %v919 = vmul.f32 %v791, %v903
        %v920 = vmul.f32 %v792, %v904
        %v921 = vmul.f32 %v793, %v905
        %v922 = vmul.f32 %v794, %v906
        %v923 = vmul.f32 %v795, %v907
        %v924 = vmul.f32 %v796, %v908
        %v925 = vmul.f32 %v797, %v909
        %v926 = vmul.f32 %v798, %v910
        %v927 = vmul.f32 %v799, %v911
        %v928 = vmul.f32 %v800, %v912
        %v929 = vmul.f32 %v801, %v913
        %v930 = vmul.f32 %v802, %v914
        %v931 = vmul.f32 %v803, %v915
        %v932 = vld [vmem:[%s5] sm:$0x1]
        %v934 = vlaneseq
        %v935 = vshrl.u32 %v934, 7
        %v936 = vsub.s32 0, %v935
        %v937 = vrot.slane %v932, %v936
        %v939 = vmul.f32 %v916, %v937
        %v940 = vmul.f32 %v917, %v937
        %v941 = vmul.f32 %v918, %v937
        %v942 = vmul.f32 %v919, %v937
        %v943 = vmul.f32 %v920, %v937
        %v944 = vmul.f32 %v921, %v937
        %v945 = vmul.f32 %v922, %v937
        %v946 = vmul.f32 %v923, %v937
        %v947 = vmul.f32 %v924, %v937
        %v948 = vmul.f32 %v925, %v937
        %v949 = vmul.f32 %v926, %v937
        %v950 = vmul.f32 %v927, %v937
        %v951 = vmul.f32 %v928, %v937
        %v952 = vmul.f32 %v929, %v937
        %v953 = vmul.f32 %v930, %v937
        %v954 = vmul.f32 %v931, %v937
        %v955 = vld [vmem:[%s6] sm:$0x1]
        %v957 = vlaneseq
        %v958 = vshrl.u32 %v957, 7
        %v959 = vsub.s32 0, %v958
        %v960 = vrot.slane %v955, %v959
        %v962 = vadd.f32 %v939, %v960
        %v963 = vadd.f32 %v940, %v960
        %v964 = vadd.f32 %v941, %v960
        %v965 = vadd.f32 %v942, %v960
        %v966 = vadd.f32 %v943, %v960
        %v967 = vadd.f32 %v944, %v960
        %v968 = vadd.f32 %v945, %v960
        %v969 = vadd.f32 %v946, %v960
        %v970 = vadd.f32 %v947, %v960
        %v971 = vadd.f32 %v948, %v960
        %v972 = vadd.f32 %v949, %v960
        %v973 = vadd.f32 %v950, %v960
        %v974 = vadd.f32 %v951, %v960
        %v975 = vadd.f32 %v952, %v960
        %v976 = vadd.f32 %v953, %v960
        %v977 = vadd.f32 %v954, %v960
        %978 = vst [vmem:[%s272] sm:$0xff] %v962
        %979 = vst [vmem:[%s272 + $0x8] sm:$0xff] %v963
        %980 = vst [vmem:[%s272 + $0x10] sm:$0xff] %v964
        %981 = vst [vmem:[%s272 + $0x18] sm:$0xff] %v965
        %982 = vst [vmem:[%s272 + $0x20] sm:$0xff] %v966
        %983 = vst [vmem:[%s272 + $0x28] sm:$0xff] %v967
        %984 = vst [vmem:[%s272 + $0x30] sm:$0xff] %v968
        %985 = vst [vmem:[%s272 + $0x38] sm:$0xff] %v969
        %986 = vst [vmem:[%s272 + $0x40] sm:$0xff] %v970
        %987 = vst [vmem:[%s272 + $0x48] sm:$0xff] %v971
        %988 = vst [vmem:[%s272 + $0x50] sm:$0xff] %v972
        %989 = vst [vmem:[%s272 + $0x58] sm:$0xff] %v973
        %990 = vst [vmem:[%s272 + $0x60] sm:$0xff] %v974
        %991 = vst [vmem:[%s272 + $0x68] sm:$0xff] %v975
        %992 = vst [vmem:[%s272 + $0x70] sm:$0xff] %v976
        %993 = vst [vmem:[%s272 + $0x78] sm:$0xff] %v977
        %s994 = sand.u32 %s181, 1
        %s995 = scalar_lea.sflag [#allocation3], %s994
        %s996 = sand.u32 %s181, 1
        %s997 = smul.addr %s996, 128
        %s998 = scalar_lea.vmem [#allocation2], %s997
        // Predicated region
        $region49: #{tpu_custom_call.1} parent=47 // pred_check
          %p999 = pneg %p191
        $region50: #{tpu_custom_call.1} parent=47 // pred_check_branch
          %1001 = sbr.rel (%p999) target = $region52
        $region51: #{tpu_custom_call.1} parent=47 // pred_region
          %s1002 = smul.u32 16, %s21
          %s1004 = ssub.s32 2048, 2048
          %1005 = vsyncadd %s995, %s1004
          %s1006 = smul.addr %s1002, 128
          %s1007 = scalar_lea.hbm %s7, %s1006
          %s1008 = sshll.u32 %s998, 4
          %s1009 = int_to_ptr.vmem [resolvable:$true] %s1008
          %1014 = dma.vmem_to_hbm [thread:$0]  %s1009, 2048, %s1007, %s995, 128, 128, 8
        $region52: #{tpu_custom_call.1} parent=47 // pred_fallthru
          _
      $region48: #{tpu_custom_call.1} parent=5 // pred_fallthru
        _
      %p1015 = scmp.le.s32.totalorder 2, %s16
      // Predicated region
      $region53: #{tpu_custom_call.1} parent=5 // pred_check
        %p1016 = pneg %p1015
      $region54: #{tpu_custom_call.1} parent=5 // pred_check_branch
        %1018 = sbr.rel (%p1016) target = $region56
      $region55: #{tpu_custom_call.1} parent=5 // pred_region
        %s1019 = ssub.s32 %s16, 2
        // Predicated region
        $region57: #{tpu_custom_call.1} parent=55 // pred_check
          %p1020 = pneg %p197
        $region58: #{tpu_custom_call.1} parent=55 // pred_check_branch
          %1022 = sbr.rel (%p1020) target = $region60
        $region59: #{tpu_custom_call.1} parent=55 // pred_region
          %s1023 = sand.u32 %s182, 1
          %s1024 = scalar_lea.sflag [#allocation3], %s1023
          %s1025 = sand.u32 %s182, 1
          %s1026 = smul.addr %s1025, 128
          %s1027 = scalar_lea.vmem [#allocation2], %s1026
          %1028 = dma.done %s1024, 2048
        $region60: #{tpu_custom_call.1} parent=55 // pred_fallthru
          _
      $region56: #{tpu_custom_call.1} parent=5 // pred_fallthru
        _
    $region6: #{tpu_custom_call.1} parent=1 // loop_footer
      %s20 = sadd.s32 1, %s16
    $region7: #{tpu_custom_call.1} parent=1 // loop_footer_branch
      %15 = sbr.rel target = $region3
    $region8: #{tpu_custom_call.1} parent=1 // loop_exit
      _
    %1029 = vsyncpa [#allocation3], 1
    %s1030 = scalar_lea.sflag [#allocation3], 1
    %1031 = vsyncpa %s1030, 1

// kernel: tpu_custom_call.1
$region0: #{tpu_custom_call.1}
  #allocation0 [shape = 'u32[]', space=smem, size = 0x4, offset = 0x4, fixed_abs, tag = 'smem constant byte address 0x4 - core index']
  #allocation1 [shape = 'u32[144,128]{1,0:T(1,128)}', space=vmem, size = 0x12000, scoped, tag = 'internal scratch']
  %s0 = inlined_call_operand.vmem [shape: bf16[256,32], index: 0, kind: input, shape index: {}]
  %s1 = inlined_call_operand.vmem [shape: bf16[32,256], index: 1, kind: input, shape index: {}]
  %s2 = inlined_call_operand.vmem [shape: f32[1,256], index: 2, kind: input, shape index: {}]
  %s3 = inlined_call_operand.vmem [shape: bf16[128,128], index: 3, kind: input, shape index: {}]
  %s4 = inlined_call_operand.vmem [shape: f32[1,128], index: 4, kind: input, shape index: {}]
  %s5 = inlined_call_operand.vmem [shape: f32[1,128], index: 5, kind: input, shape index: {}]
  %s6 = inlined_call_operand.vmem [shape: f32[1,128], index: 6, kind: input, shape index: {}]
  %s7 = inlined_call_operand.hbm [shape: f32[256,128], index: 7, kind: output, shape index: {}]
  %s8 = sld [smem:[#allocation0]]
  $region61: #{tpu_custom_call.1} parent=0
    _
  %s10 = ssub.s32 1, %s8
  %s11 = scalar_select 0, %s10, %s8
  $region1: #{tpu_custom_call.1} parent=0
    #allocation2 [shape = 'u8[131072]{0}', space=vmem, size = 0x20000, scoped, tag = 'output window, operand 0']
    #allocation3 [shape = 's32[2]{0}', space=sflag, size = 0x8, scoped, tag = 'scoped memory for tpu_custom_call.1']
    %12 = vsyncpa [#allocation3], 0
    %s13 = scalar_lea.sflag [#allocation3], 1
    %14 = vsyncpa %s13, 0
    loop: start=0, step=1, limit=4
    $region2: #{tpu_custom_call.1} parent=1 // loop_pre_header
      _
    $region3: #{tpu_custom_call.1} parent=1 // loop_header
      %s16 = sphi 0, %s20
      %p17 = scmp.ge.s32.totalorder %s16, 4
      %s26 = sphi 0, %s28
      %s29 = sphi 0, %s26
      %s30 = sphi 0, %s29
      %s46 = sphi 0, %s30
      %s50 = sphi 0, %s50
      %s52 = sphi 0, %s50
      %s53 = sphi 0, %s52
      %s67 = sphi 0, %s53
      %s71 = sphi 0, %s71
      %s73 = sphi 0, %s71
      %s74 = sphi 0, %s73
      %s88 = sphi 0, %s74
      %s92 = sphi 0, %s92
      %s94 = sphi 0, %s92
      %s95 = sphi 0, %s94
      %s109 = sphi 0, %s95
      %s113 = sphi 0, %s113
      %s115 = sphi 0, %s113
      %s116 = sphi 0, %s115
      %s130 = sphi 0, %s116
      %s134 = sphi 0, %s134
      %s136 = sphi 0, %s134
      %s137 = sphi 0, %s136
      %s151 = sphi 0, %s137
      %s155 = sphi 0, %s155
      %s157 = sphi 0, %s155
      %s158 = sphi 0, %s157
      %s172 = sphi 0, %s158
      %s178 = sphi 0, %s180
      %s181 = sphi 0, %s178
      %s182 = sphi 0, %s181
      %s198 = sphi 0, %s182
    $region4: #{tpu_custom_call.1} parent=1 // loop_header_branch
      %19 = sbr.rel (%p17) target = $region8
    $region5: #{tpu_custom_call.1} parent=1 // loop_body
      %s21 = ssub.s32 %s16, 1
      %s22 = ssub.s32 %s16, 2
      %s23 = sadd.s32 %s16, 1
      %s24 = ssub.s32 %s16, %s23
      %p25 = scmp.eq.s32.totalorder %s24, 0
      %s27 = sadd.s32 %s26, 1
      %s28 = scalar_select %p25, %s26, %s27
      %p31 = pneg %p25
      %p32 = scmp.eq.s32.totalorder %s16, 1
      %p33 = por %p31, %p32
      %p34 = scmp.ne.s32.totalorder %s26, %s29
      %p35 = scmp.eq.s32.totalorder %s16, 0
      %p36 = por %p34, %p35
      %p37 = scmp.ne.s32.totalorder %s26, %s29
      %p38 = scmp.eq.s32.totalorder %s21, 1
      %p39 = por %p37, %p38
      %p40 = scmp.ne.s32.totalorder %s29, %s30
      %p41 = scmp.eq.s32.totalorder %s21, 0
      %p42 = por %p40, %p41
      %p43 = scmp.ne.s32.totalorder %s29, %s30
      %p44 = scmp.eq.s32.totalorder %s22, 1
      %p45 = por %p43, %p44
      %p47 = scmp.ne.s32.totalorder %s30, %s46
      %p48 = scmp.eq.s32.totalorder %s22, 0
      %p49 = por %p47, %p48
      %s51 = sadd.s32 %s50, 1
      %p54 = scmp.eq.s32.totalorder %s16, 1
      %p55 = scmp.ne.s32.totalorder %s50, %s52
      %p56 = scmp.eq.s32.totalorder %s16, 0
      %p57 = por %p55, %p56
      %p58 = scmp.ne.s32.totalorder %s50, %s52
      %p59 = scmp.eq.s32.totalorder %s21, 1
      %p60 = por %p58, %p59
      %p61 = scmp.ne.s32.totalorder %s52, %s53
      %p62 = scmp.eq.s32.totalorder %s21, 0
      %p63 = por %p61, %p62
      %p64 = scmp.ne.s32.totalorder %s52, %s53
      %p65 = scmp.eq.s32.totalorder %s22, 1
      %p66 = por %p64, %p65
      %p68 = scmp.ne.s32.totalorder %s53, %s67
      %p69 = scmp.eq.s32.totalorder %s22, 0
      %p70 = por %p68, %p69
      %s72 = sadd.s32 %s71, 1
      %p75 = scmp.eq.s32.totalorder %s16, 1
      %p76 = scmp.ne.s32.totalorder %s71, %s73
      %p77 = scmp.eq.s32.totalorder %s16, 0
      %p78 = por %p76, %p77
      %p79 = scmp.ne.s32.totalorder %s71, %s73
      %p80 = scmp.eq.s32.totalorder %s21, 1
      %p81 = por %p79, %p80
      %p82 = scmp.ne.s32.totalorder %s73, %s74
      %p83 = scmp.eq.s32.totalorder %s21, 0
      %p84 = por %p82, %p83
      %p85 = scmp.ne.s32.totalorder %s73, %s74
      %p86 = scmp.eq.s32.totalorder %s22, 1
      %p87 = por %p85, %p86
      %p89 = scmp.ne.s32.totalorder %s74, %s88
      %p90 = scmp.eq.s32.totalorder %s22, 0
      %p91 = por %p89, %p90
      %s93 = sadd.s32 %s92, 1
      %p96 = scmp.eq.s32.totalorder %s16, 1
      %p97 = scmp.ne.s32.totalorder %s92, %s94
      %p98 = scmp.eq.s32.totalorder %s16, 0
      %p99 = por %p97, %p98
      %p100 = scmp.ne.s32.totalorder %s92, %s94
      %p101 = scmp.eq.s32.totalorder %s21, 1
      %p102 = por %p100, %p101
      %p103 = scmp.ne.s32.totalorder %s94, %s95
      %p104 = scmp.eq.s32.totalorder %s21, 0
      %p105 = por %p103, %p104
      %p106 = scmp.ne.s32.totalorder %s94, %s95
      %p107 = scmp.eq.s32.totalorder %s22, 1
      %p108 = por %p106, %p107
      %p110 = scmp.ne.s32.totalorder %s95, %s109
      %p111 = scmp.eq.s32.totalorder %s22, 0
      %p112 = por %p110, %p111
      %s114 = sadd.s32 %s113, 1
      %p117 = scmp.eq.s32.totalorder %s16, 1
      %p118 = scmp.ne.s32.totalorder %s113, %s115
      %p119 = scmp.eq.s32.totalorder %s16, 0
      %p120 = por %p118, %p119
      %p121 = scmp.ne.s32.totalorder %s113, %s115
      %p122 = scmp.eq.s32.totalorder %s21, 1
      %p123 = por %p121, %p122
      %p124 = scmp.ne.s32.totalorder %s115, %s116
      %p125 = scmp.eq.s32.totalorder %s21, 0
      %p126 = por %p124, %p125
      %p127 = scmp.ne.s32.totalorder %s115, %s116
      %p128 = scmp.eq.s32.totalorder %s22, 1
      %p129 = por %p127, %p128
      %p131 = scmp.ne.s32.totalorder %s116, %s130
      %p132 = scmp.eq.s32.totalorder %s22, 0
      %p133 = por %p131, %p132
      %s135 = sadd.s32 %s134, 1
      %p138 = scmp.eq.s32.totalorder %s16, 1
      %p139 = scmp.ne.s32.totalorder %s134, %s136
      %p140 = scmp.eq.s32.totalorder %s16, 0
      %p141 = por %p139, %p140
      %p142 = scmp.ne.s32.totalorder %s134, %s136
      %p143 = scmp.eq.s32.totalorder %s21, 1
      %p144 = por %p142, %p143
      %p145 = scmp.ne.s32.totalorder %s136, %s137
      %p146 = scmp.eq.s32.totalorder %s21, 0
      %p147 = por %p145, %p146
      %p148 = scmp.ne.s32.totalorder %s136, %s137
      %p149 = scmp.eq.s32.totalorder %s22, 1
      %p150 = por %p148, %p149
      %p152 = scmp.ne.s32.totalorder %s137, %s151
      %p153 = scmp.eq.s32.totalorder %s22, 0
      %p154 = por %p152, %p153
      %s156 = sadd.s32 %s155, 1
      %p159 = scmp.eq.s32.totalorder %s16, 1
      %p160 = scmp.ne.s32.totalorder %s155, %s157
      %p161 = scmp.eq.s32.totalorder %s16, 0
      %p162 = por %p160, %p161
      %p163 = scmp.ne.s32.totalorder %s155, %s157
      %p164 = scmp.eq.s32.totalorder %s21, 1
      %p165 = por %p163, %p164
      %p166 = scmp.ne.s32.totalorder %s157, %s158
      %p167 = scmp.eq.s32.totalorder %s21, 0
      %p168 = por %p166, %p167
      %p169 = scmp.ne.s32.totalorder %s157, %s158
      %p170 = scmp.eq.s32.totalorder %s22, 1
      %p171 = por %p169, %p170
      %p173 = scmp.ne.s32.totalorder %s158, %s172
      %p174 = scmp.eq.s32.totalorder %s22, 0
      %p175 = por %p173, %p174
      %s176 = ssub.s32 %s16, %s23
      %p177 = scmp.eq.s32.totalorder %s176, 0
      %s179 = sadd.s32 %s178, 1
      %s180 = scalar_select %p177, %s178, %s179
      %p183 = pneg %p177
      %p184 = scmp.eq.s32.totalorder %s16, 1
      %p185 = por %p183, %p184
      %p186 = scmp.ne.s32.totalorder %s178, %s181
      %p187 = scmp.eq.s32.totalorder %s16, 0
      %p188 = por %p186, %p187
      %p189 = scmp.ne.s32.totalorder %s178, %s181
      %p190 = scmp.eq.s32.totalorder %s21, 1
      %p191 = por %p189, %p190
      %p192 = scmp.ne.s32.totalorder %s181, %s182
      %p193 = scmp.eq.s32.totalorder %s21, 0
      %p194 = por %p192, %p193
      %p195 = scmp.ne.s32.totalorder %s181, %s182
      %p196 = scmp.eq.s32.totalorder %s22, 1
      %p197 = por %p195, %p196
      %p199 = scmp.ne.s32.totalorder %s182, %s198
      %p200 = scmp.eq.s32.totalorder %s22, 0
      %p201 = por %p199, %p200
      %p202 = scmp.le.s32.totalorder 1, %s16
      %p203 = scmp.lt.s32.totalorder %s16, 3
      %p204 = pnand %p202, %p203
      %p205 = pneg %p204
      // Predicated region
      $region9: #{tpu_custom_call.1} parent=5 // pred_check
        _
      $region10: #{tpu_custom_call.1} parent=5 // pred_check_branch
        %207 = sbr.rel (%p204) target = $region12
      $region11: #{tpu_custom_call.1} parent=5 // pred_region
        %s208 = ssub.s32 %s16, 1
        // Predicated region
        $region13: #{tpu_custom_call.1} parent=11 // pred_check
          %p209 = pneg %p63
        $region14: #{tpu_custom_call.1} parent=11 // pred_check_branch
          %211 = sbr.rel (%p209) target = $region16
        $region15: #{tpu_custom_call.1} parent=11 // pred_region
          _
        $region16: #{tpu_custom_call.1} parent=11 // pred_fallthru
          _
        // Predicated region
        $region17: #{tpu_custom_call.1} parent=11 // pred_check
          %p212 = pneg %p84
        $region18: #{tpu_custom_call.1} parent=11 // pred_check_branch
          %214 = sbr.rel (%p212) target = $region20
        $region19: #{tpu_custom_call.1} parent=11 // pred_region
          _
        $region20: #{tpu_custom_call.1} parent=11 // pred_fallthru
          _
        // Predicated region
        $region21: #{tpu_custom_call.1} parent=11 // pred_check
          %p215 = pneg %p105
        $region22: #{tpu_custom_call.1} parent=11 // pred_check_branch
          %217 = sbr.rel (%p215) target = $region24
        $region23: #{tpu_custom_call.1} parent=11 // pred_region
          _
        $region24: #{tpu_custom_call.1} parent=11 // pred_fallthru
          _
        // Predicated region
        $region25: #{tpu_custom_call.1} parent=11 // pred_check
          %p218 = pneg %p126
        $region26: #{tpu_custom_call.1} parent=11 // pred_check_branch
          %220 = sbr.rel (%p218) target = $region28
        $region27: #{tpu_custom_call.1} parent=11 // pred_region
          _
        $region28: #{tpu_custom_call.1} parent=11 // pred_fallthru
          _
        // Predicated region
        $region29: #{tpu_custom_call.1} parent=11 // pred_check
          %p221 = pneg %p147
        $region30: #{tpu_custom_call.1} parent=11 // pred_check_branch
          %223 = sbr.rel (%p221) target = $region32
        $region31: #{tpu_custom_call.1} parent=11 // pred_region
          _
        $region32: #{tpu_custom_call.1} parent=11 // pred_fallthru
          _
        // Predicated region
        $region33: #{tpu_custom_call.1} parent=11 // pred_check
          %p224 = pneg %p168
        $region34: #{tpu_custom_call.1} parent=11 // pred_check_branch
          %226 = sbr.rel (%p224) target = $region36
        $region35: #{tpu_custom_call.1} parent=11 // pred_region
          _
        $region36: #{tpu_custom_call.1} parent=11 // pred_fallthru
          _
      $region12: #{tpu_custom_call.1} parent=5 // pred_fallthru
        _
      %p227 = scmp.lt.s32.totalorder %s16, 2
      // Predicated region
      $region37: #{tpu_custom_call.1} parent=5 // pred_check
        %p228 = pneg %p227
      $region38: #{tpu_custom_call.1} parent=5 // pred_check_branch
        %230 = sbr.rel (%p228) target = $region40
      $region39: #{tpu_custom_call.1} parent=5 // pred_region
        // Predicated region
        $region41: #{tpu_custom_call.1} parent=39 // pred_check
          %p231 = pneg %p36
        $region42: #{tpu_custom_call.1} parent=39 // pred_check_branch
          %233 = sbr.rel (%p231) target = $region44
        $region43: #{tpu_custom_call.1} parent=39 // pred_region
          %s234 = smul.u32 16, %s16
          %p235 = scmp.lt.s32.totalorder %s234, 31
          %s236 = scalar_select %p235, %s234, 31
          %s237 = smul.addr %s236, 4
          %s238 = scalar_lea.vmem %s0, %s237
          %s239 = smul.u32 16, %s16
        $region44: #{tpu_custom_call.1} parent=39 // pred_fallthru
          _
      $region40: #{tpu_custom_call.1} parent=5 // pred_fallthru
        _
      %p240 = scmp.le.s32.totalorder 1, %s16
      %p241 = scmp.lt.s32.totalorder %s16, 3
      %p242 = pnand %p240, %p241
      %p243 = pneg %p242
      // Predicated region
      $region45: #{tpu_custom_call.1} parent=5 // pred_check
        _
      $region46: #{tpu_custom_call.1} parent=5 // pred_check_branch
        %245 = sbr.rel (%p242) target = $region48
      $region47: #{tpu_custom_call.1} parent=5 // pred_region
        %s246 = ssub.s32 %s16, 1
        %s247 = smul.u32 16, %s21
        %p248 = scmp.lt.s32.totalorder %s247, 31
        %s249 = scalar_select %p248, %s247, 31
        %s250 = smul.addr %s249, 4
        %s251 = scalar_lea.vmem %s0, %s250
        %p252 = pneg %p42
        %p253 = pneg %p39
        %p254 = pneg %p63
        %p255 = pneg %p60
        %p256 = pneg %p84
        %p257 = pneg %p81
        %p258 = pneg %p105
        %p259 = pneg %p102
        %p260 = pneg %p126
        %p261 = pneg %p123
        %p262 = pneg %p147
        %p263 = pneg %p144
        %p264 = pneg %p168
        %p265 = pneg %p165
        %p266 = pneg %p194
        %p267 = pneg %p191
        %s268 = sand.u32 %s181, 1
        %s269 = scalar_lea.sflag [#allocation3], %s268
        %s270 = sand.u32 %s181, 1
        %s271 = smul.addr %s270, 128
        %s272 = scalar_lea.vmem [#allocation2], %s271
        %s273 = smul.u32 16, %s21
        %p274 = scmp.lt.s32.totalorder %s273, 31
        %s275 = scalar_select %p274, %s273, 31
        %s276 = smul.addr %s275, 4
        %s277 = scalar_lea.vmem %s0, %s276
        %s278 = smul.u32 16, %s21
        %s279 = smul.u32 16, %s21
        %v281 = vld [vmem:[%s277] sm:$0xf]
        %v282 = vld [vmem:[%s277 + $0x4] sm:$0xf]
        %v283 = vld [vmem:[%s277 + $0x8] sm:$0xf]
        %v284 = vld [vmem:[%s277 + $0xc] sm:$0xf]
        %v285 = vld [vmem:[%s277 + $0x10] sm:$0xf]
        %v286 = vld [vmem:[%s277 + $0x14] sm:$0xf]
        %v287 = vld [vmem:[%s277 + $0x18] sm:$0xf]
        %v288 = vld [vmem:[%s277 + $0x1c] sm:$0xf]
        %v289 = vld [vmem:[%s277 + $0x20] sm:$0xf]
        %v290 = vld [vmem:[%s277 + $0x24] sm:$0xf]
        %v291 = vld [vmem:[%s277 + $0x28] sm:$0xf]
        %v292 = vld [vmem:[%s277 + $0x2c] sm:$0xf]
        %v293 = vld [vmem:[%s277 + $0x30] sm:$0xf]
        %v294 = vld [vmem:[%s277 + $0x34] sm:$0xf]
        %v295 = vld [vmem:[%s277 + $0x38] sm:$0xf]
        %v296 = vld [vmem:[%s277 + $0x3c] sm:$0xf]
        %v297 = vld [vmem:[%s1] sm:$0xff]
        %v298 = vld [vmem:[%s1 + $0x8] sm:$0xff]
        %v299 = vld [vmem:[%s1 + $0x10] sm:$0xff]
        %v300 = vld [vmem:[%s1 + $0x18] sm:$0xff]
        %v301 = vld [vmem:[%s2] sm:$0x3]
        %v303 = vlaneseq
        %v304 = vshrl.u32 %v303, 7
        %v305 = vsub.s32 0, %v304
        %v306 = vrot.slane %v301, %v305
        %v307 = vlaneseq
        %v308 = vshrl.u32 %v307, 7
        %v309 = vsub.s32 1, %v308
        %v310 = vrot.slane %v301, %v309
        %v329 = vunpack.c.l.b16 %v281
        %v330 = vunpack.c.l.b16 %v282
        %v331 = vunpack.c.l.b16 %v283
        %v332 = vunpack.c.l.b16 %v284
        %v333 = vunpack.c.l.b16 %v285
        %v334 = vunpack.c.l.b16 %v286
        %v335 = vunpack.c.l.b16 %v287
        %v336 = vunpack.c.l.b16 %v288
        %v337 = vunpack.c.l.b16 %v289
        %v338 = vunpack.c.l.b16 %v290
        %v339 = vunpack.c.l.b16 %v291
        %v340 = vunpack.c.l.b16 %v292
        %v341 = vunpack.c.l.b16 %v293
        %v342 = vunpack.c.l.b16 %v294
        %v343 = vunpack.c.l.b16 %v295
        %v344 = vunpack.c.l.b16 %v296
        %v345 = vpack.c.b16 %v330, %v329
        %v346 = vpack.c.b16 %v332, %v331
        %v347 = vpack.c.b16 %v334, %v333
        %v348 = vpack.c.b16 %v336, %v335
        %v349 = vpack.c.b16 %v338, %v337
        %v350 = vpack.c.b16 %v340, %v339
        %v351 = vpack.c.b16 %v342, %v341
        %v352 = vpack.c.b16 %v344, %v343
        %v357 = vunpack.c.l.b16 %v297
        %v358 = vunpack.c.h.b16 %v297
        %v359 = vunpack.c.l.b16 %v298
        %v360 = vunpack.c.h.b16 %v298
        %v361 = vunpack.c.l.b16 %v299
        %v362 = vunpack.c.h.b16 %v299
        %v363 = vunpack.c.l.b16 %v300
        %v364 = vunpack.c.h.b16 %v300
        %v365 = vpack.c.b16 %v359, %v357
        %v366 = vpack.c.b16 %v360, %v358
        %v367 = vpack.c.b16 %v363, %v361
        %v368 = vpack.c.b16 %v364, %v362
        %vm373 = vcmask 261120
        %v375 = vsel %vm373, %v345, 0
        %v378 = vsel %vm373, %v346, 0
        %v381 = vsel %vm373, %v347, 0
        %v384 = vsel %vm373, %v348, 0
        %v387 = vsel %vm373, %v349, 0
        %v390 = vsel %vm373, %v350, 0
        %v393 = vsel %vm373, %v351, 0
        %v396 = vsel %vm373, %v352, 0
        %398 = vmatprep.subr.bf16.mxu0 %v366
        %399 = vmatpush1.bf16.msra.mxu0 %v365
        %400 = vmatprep.subr.bf16.mxu0 %v368
        %401 = vmatpush1.bf16.msra.mxu0 %v367
        %402 = vmatprep.subr.bf16.mxu0 0
        %403 = vmatpush1.bf16.msra.mxu0 0
        %404 = vmatprep.subr.bf16.mxu0 0
        %405 = vmatpush1.bf16.msra.mxu0 0
        %406 = vmatprep.subr.bf16.mxu0 0
        %407 = vmatpush1.bf16.msra.mxu0 0
        %408 = vmatprep.subr.bf16.mxu0 0
        %409 = vmatpush1.bf16.msra.mxu0 0
        %410 = vmatprep.subr.bf16.mxu0 0
        %411 = vmatpush1.bf16.msra.mxu0 0
        %412 = vmatprep.subr.bf16.mxu0 0
        %413 = vmatpush1.bf16.msra.mxu0 0
        %414 = vmatprep.subr.bf16.mxu0 0
        %415 = vmatpush1.bf16.msra.mxu0 0
        %416 = vmatprep.subr.bf16.mxu0 0
        %417 = vmatpush1.bf16.msra.mxu0 0
        %418 = vmatprep.subr.bf16.mxu0 0
        %419 = vmatpush1.bf16.msra.mxu0 0
        %420 = vmatprep.subr.bf16.mxu0 0
        %421 = vmatpush1.bf16.msra.mxu0 0
        %422 = vmatprep.subr.bf16.mxu0 0
        %423 = vmatpush1.bf16.msra.mxu0 0
        %424 = vmatprep.subr.bf16.mxu0 0
        %425 = vmatpush1.bf16.msra.mxu0 0
        %426 = vmatprep.subr.bf16.mxu0 0
        %427 = vmatpush1.bf16.msra.mxu0 0
        %428 = vmatprep.subr.bf16.mxu0 0
        %429 = vmatpush1.bf16.msra.mxu0 0
        %430 = vmatprep.mubr.bf16.mxu0 0
        %431 = vmatmul.mubr.bf16.gmra.mrb[0].mxu0 %v375
        %v432 = vpop.f32.mrb[0].mxu0
        %v433 = vadd.f32 %v306, %v432
        %v434 = vpop.f32.mrb[0].mxu0
        %v435 = vadd.f32 %v310, %v434
        %v436 = vpop.f32.mrb[0].mxu0
        %v437 = vadd.f32 %v306, %v436
        %v438 = vpop.f32.mrb[0].mxu0
        %v439 = vadd.f32 %v310, %v438
        %440 = vmatprep.mubr.bf16.mxu0 0
        %441 = vmatmul.mubr.bf16.gmra.mrb[0].mxu0 %v378
        %v442 = vpop.f32.mrb[0].mxu0
        %v443 = vadd.f32 %v306, %v442
        %v444 = vpop.f32.mrb[0].mxu0
        %v445 = vadd.f32 %v310, %v444
        %v446 = vpop.f32.mrb[0].mxu0
        %v447 = vadd.f32 %v306, %v446
        %v448 = vpop.f32.mrb[0].mxu0
        %v449 = vadd.f32 %v310, %v448
        %450 = vmatprep.mubr.bf16.mxu0 0
        %451 = vmatmul.mubr.bf16.gmra.mrb[0].mxu0 %v381
        %v452 = vpop.f32.mrb[0].mxu0
        %v453 = vadd.f32 %v306, %v452
        %v454 = vpop.f32.mrb[0].mxu0
        %v455 = vadd.f32 %v310, %v454
        %v456 = vpop.f32.mrb[0].mxu0
        %v457 = vadd.f32 %v306, %v456
        %v458 = vpop.f32.mrb[0].mxu0
        %v459 = vadd.f32 %v310, %v458
        %460 = vmatprep.mubr.bf16.mxu0 0
        %461 = vmatmul.mubr.bf16.gmra.mrb[0].mxu0 %v384
        %v462 = vpop.f32.mrb[0].mxu0
        %v463 = vadd.f32 %v306, %v462
        %v464 = vpop.f32.mrb[0].mxu0
        %v465 = vadd.f32 %v310, %v464
        %v466 = vpop.f32.mrb[0].mxu0
        %v467 = vadd.f32 %v306, %v466
        %v468 = vpop.f32.mrb[0].mxu0
        %v469 = vadd.f32 %v310, %v468
        %470 = vmatprep.mubr.bf16.mxu0 0
        %471 = vmatmul.mubr.bf16.gmra.mrb[0].mxu0 %v387
        %v472 = vpop.f32.mrb[0].mxu0
        %v473 = vadd.f32 %v306, %v472
        %v474 = vpop.f32.mrb[0].mxu0
        %v475 = vadd.f32 %v310, %v474
        %v476 = vpop.f32.mrb[0].mxu0
        %v477 = vadd.f32 %v306, %v476
        %v478 = vpop.f32.mrb[0].mxu0
        %v479 = vadd.f32 %v310, %v478
        %480 = vmatprep.mubr.bf16.mxu0 0
        %481 = vmatmul.mubr.bf16.gmra.mrb[0].mxu0 %v390
        %v482 = vpop.f32.mrb[0].mxu0
        %v483 = vadd.f32 %v306, %v482
        %v484 = vpop.f32.mrb[0].mxu0
        %v485 = vadd.f32 %v310, %v484
        %v486 = vpop.f32.mrb[0].mxu0
        %v487 = vadd.f32 %v306, %v486
        %v488 = vpop.f32.mrb[0].mxu0
        %v489 = vadd.f32 %v310, %v488
        %490 = vmatprep.mubr.bf16.mxu0 0
        %491 = vmatmul.mubr.bf16.gmra.mrb[0].mxu0 %v393
        %v492 = vpop.f32.mrb[0].mxu0
        %v493 = vadd.f32 %v306, %v492
        %v494 = vpop.f32.mrb[0].mxu0
        %v495 = vadd.f32 %v310, %v494
        %v496 = vpop.f32.mrb[0].mxu0
        %v497 = vadd.f32 %v306, %v496
        %v498 = vpop.f32.mrb[0].mxu0
        %v499 = vadd.f32 %v310, %v498
        %500 = vmatprep.mubr.bf16.mxu0 0
        %501 = vmatmul.mubr.bf16.gmra.mrb[0].mxu0 %v396
        %v502 = vpop.f32.mrb[0].mxu0
        %v503 = vadd.f32 %v306, %v502
        %v504 = vpop.f32.mrb[0].mxu0
        %v505 = vadd.f32 %v310, %v504
        %v506 = vpop.f32.mrb[0].mxu0
        %v507 = vadd.f32 %v306, %v506
        %v508 = vpop.f32.mrb[0].mxu0
        %v509 = vadd.f32 %v310, %v508
        %510 = vdwg.mxu0
        %v511 = vmax.f32 %v433, 0.0
        %v512 = vmax.f32 %v437, 0.0
        %v513 = vmax.f32 %v443, 0.0
        %v514 = vmax.f32 %v447, 0.0
        %v515 = vmax.f32 %v453, 0.0
        %v516 = vmax.f32 %v457, 0.0
        %v517 = vmax.f32 %v463, 0.0
        %v518 = vmax.f32 %v467, 0.0
        %v519 = vmax.f32 %v473, 0.0
        %v520 = vmax.f32 %v477, 0.0
        %v521 = vmax.f32 %v483, 0.0
        %v522 = vmax.f32 %v487, 0.0
        %v523 = vmax.f32 %v493, 0.0
        %v524 = vmax.f32 %v497, 0.0
        %v525 = vmax.f32 %v503, 0.0
        %v526 = vmax.f32 %v507, 0.0
        %v527 = vpack.c.bf16 %v512, %v511
        %v528 = vpack.c.bf16 %v514, %v513
        %v529 = vpack.c.bf16 %v516, %v515
        %v530 = vpack.c.bf16 %v518, %v517
        %v531 = vpack.c.bf16 %v520, %v519
        %v532 = vpack.c.bf16 %v522, %v521
        %v533 = vpack.c.bf16 %v524, %v523
        %v534 = vpack.c.bf16 %v526, %v525
        %v535 = vld [vmem:[%s3] sm:$0xf]
        %v536 = vld [vmem:[%s3 + $0x4] sm:$0xf]
        %v537 = vld [vmem:[%s3 + $0x8] sm:$0xf]
        %v538 = vld [vmem:[%s3 + $0xc] sm:$0xf]
        %v539 = vld [vmem:[%s3 + $0x10] sm:$0xf]
        %v540 = vld [vmem:[%s3 + $0x14] sm:$0xf]
        %v541 = vld [vmem:[%s3 + $0x18] sm:$0xf]
        %v542 = vld [vmem:[%s3 + $0x1c] sm:$0xf]
        %v543 = vld [vmem:[%s3 + $0x20] sm:$0xf]
        %v544 = vld [vmem:[%s3 + $0x24] sm:$0xf]
        %v545 = vld [vmem:[%s3 + $0x28] sm:$0xf]
        %v546 = vld [vmem:[%s3 + $0x2c] sm:$0xf]
        %v547 = vld [vmem:[%s3 + $0x30] sm:$0xf]
        %v548 = vld [vmem:[%s3 + $0x34] sm:$0xf]
        %v549 = vld [vmem:[%s3 + $0x38] sm:$0xf]
        %v550 = vld [vmem:[%s3 + $0x3c] sm:$0xf]
        %v551 = vld [vmem:[%s4] sm:$0x1]
        %v553 = vlaneseq
        %v554 = vshrl.u32 %v553, 7
        %v555 = vsub.s32 0, %v554
        %v556 = vrot.slane %v551, %v555
        %v574 = vunpack.c.l.b16 %v535
        %v575 = vunpack.c.l.b16 %v536
        %v576 = vunpack.c.l.b16 %v537
        %v577 = vunpack.c.l.b16 %v538
        %v578 = vunpack.c.l.b16 %v539
        %v579 = vunpack.c.l.b16 %v540
        %v580 = vunpack.c.l.b16 %v541
        %v581 = vunpack.c.l.b16 %v542
        %v582 = vunpack.c.l.b16 %v543
        %v583 = vunpack.c.l.b16 %v544
        %v584 = vunpack.c.l.b16 %v545
        %v585 = vunpack.c.l.b16 %v546
        %v586 = vunpack.c.l.b16 %v547
        %v587 = vunpack.c.l.b16 %v548
        %v588 = vunpack.c.l.b16 %v549
        %v589 = vunpack.c.l.b16 %v550
        %v590 = vpack.c.b16 %v575, %v574
        %v591 = vpack.c.b16 %v577, %v576
        %v592 = vpack.c.b16 %v579, %v578
        %v593 = vpack.c.b16 %v581, %v580
        %v594 = vpack.c.b16 %v583, %v582
        %v595 = vpack.c.b16 %v585, %v584
        %v596 = vpack.c.b16 %v587, %v586
        %v597 = vpack.c.b16 %v589, %v588
        %606 = vmatprep.subr.bf16.mxu0 0
        %607 = vmatpush1.bf16.msra.mxu0 %v590
        %608 = vmatprep.subr.bf16.mxu0 0
        %609 = vmatpush1.bf16.msra.mxu0 %v591
        %610 = vmatprep.subr.bf16.mxu0 0
        %611 = vmatpush1.bf16.msra.mxu0 %v592
        %612 = vmatprep.subr.bf16.mxu0 0
        %613 = vmatpush1.bf16.msra.mxu0 %v593
        %614 = vmatprep.subr.bf16.mxu0 0
        %615 = vmatpush1.bf16.msra.mxu0 %v594
        %616 = vmatprep.subr.bf16.mxu0 0
        %617 = vmatpush1.bf16.msra.mxu0 %v595
        %618 = vmatprep.subr.bf16.mxu0 0
        %619 = vmatpush1.bf16.msra.mxu0 %v596
        %620 = vmatprep.subr.bf16.mxu0 0
        %621 = vmatpush1.bf16.msra.mxu0 %v597
        %622 = vmatprep.subr.bf16.mxu0 0
        %623 = vmatpush1.bf16.msra.mxu0 0
        %624 = vmatprep.subr.bf16.mxu0 0
        %625 = vmatpush1.bf16.msra.mxu0 0
        %626 = vmatprep.subr.bf16.mxu0 0
        %627 = vmatpush1.bf16.msra.mxu0 0
        %628 = vmatprep.subr.bf16.mxu0 0
        %629 = vmatpush1.bf16.msra.mxu0 0
        %630 = vmatprep.subr.bf16.mxu0 0
        %631 = vmatpush1.bf16.msra.mxu0 0
        %632 = vmatprep.subr.bf16.mxu0 0
        %633 = vmatpush1.bf16.msra.mxu0 0
        %634 = vmatprep.subr.bf16.mxu0 0
        %635 = vmatpush1.bf16.msra.mxu0 0
        %636 = vmatprep.subr.bf16.mxu0 0
        %637 = vmatpush1.bf16.msra.mxu0 0
        %638 = vmatprep.mubr.bf16.mxu0 0
        %639 = vmatmul.mubr.bf16.gmra.mrb[0].mxu0 %v527
        %v640 = vpop.f32.mrb[0].mxu0
        %v641 = vadd.f32 %v556, %v640
        %v642 = vpop.f32.mrb[0].mxu0
        %v643 = vpop.f32.mrb[0].mxu0
        %v644 = vadd.f32 %v556, %v643
        %v645 = vpop.f32.mrb[0].mxu0
        %646 = vmatprep.mubr.bf16.mxu0 0
        %647 = vmatmul.mubr.bf16.gmra.mrb[0].mxu0 %v528
        %v648 = vpop.f32.mrb[0].mxu0
        %v649 = vadd.f32 %v556, %v648
        %v650 = vpop.f32.mrb[0].mxu0
        %v651 = vpop.f32.mrb[0].mxu0
        %v652 = vadd.f32 %v556, %v651
        %v653 = vpop.f32.mrb[0].mxu0
        %654 = vmatprep.mubr.bf16.mxu0 0
        %655 = vmatmul.mubr.bf16.gmra.mrb[0].mxu0 %v529
        %v656 = vpop.f32.mrb[0].mxu0
        %v657 = vadd.f32 %v556, %v656
        %v658 = vpop.f32.mrb[0].mxu0
        %v659 = vpop.f32.mrb[0].mxu0
        %v660 = vadd.f32 %v556, %v659
        %v661 = vpop.f32.mrb[0].mxu0
        %662 = vmatprep.mubr.bf16.mxu0 0
        %663 = vmatmul.mubr.bf16.gmra.mrb[0].mxu0 %v530
        %v664 = vpop.f32.mrb[0].mxu0
        %v665 = vadd.f32 %v556, %v664
        %v666 = vpop.f32.mrb[0].mxu0
        %v667 = vpop.f32.mrb[0].mxu0
        %v668 = vadd.f32 %v556, %v667
        %v669 = vpop.f32.mrb[0].mxu0
        %670 = vmatprep.mubr.bf16.mxu0 0
        %671 = vmatmul.mubr.bf16.gmra.mrb[0].mxu0 %v531
        %v672 = vpop.f32.mrb[0].mxu0
        %v673 = vadd.f32 %v556, %v672
        %v674 = vpop.f32.mrb[0].mxu0
        %v675 = vpop.f32.mrb[0].mxu0
        %v676 = vadd.f32 %v556, %v675
        %v677 = vpop.f32.mrb[0].mxu0
        %678 = vmatprep.mubr.bf16.mxu0 0
        %679 = vmatmul.mubr.bf16.gmra.mrb[0].mxu0 %v532
        %v680 = vpop.f32.mrb[0].mxu0
        %v681 = vadd.f32 %v556, %v680
        %v682 = vpop.f32.mrb[0].mxu0
        %v683 = vpop.f32.mrb[0].mxu0
        %v684 = vadd.f32 %v556, %v683
        %v685 = vpop.f32.mrb[0].mxu0
        %686 = vmatprep.mubr.bf16.mxu0 0
        %687 = vmatmul.mubr.bf16.gmra.mrb[0].mxu0 %v533
        %v688 = vpop.f32.mrb[0].mxu0
        %v689 = vadd.f32 %v556, %v688
        %v690 = vpop.f32.mrb[0].mxu0
        %v691 = vpop.f32.mrb[0].mxu0
        %v692 = vadd.f32 %v556, %v691
        %v693 = vpop.f32.mrb[0].mxu0
        %694 = vmatprep.mubr.bf16.mxu0 0
        %695 = vmatmul.mubr.bf16.gmra.mrb[0].mxu0 %v534
        %v696 = vpop.f32.mrb[0].mxu0
        %v697 = vadd.f32 %v556, %v696
        %v698 = vpop.f32.mrb[0].mxu0
        %v699 = vpop.f32.mrb[0].mxu0
        %v700 = vadd.f32 %v556, %v699
        %v701 = vpop.f32.mrb[0].mxu0
        %702 = vdwg.mxu0
        %v703 = vadd.f32 %v641, %v435
        %v704 = vadd.f32 %v644, %v439
        %v705 = vadd.f32 %v649, %v445
        %v706 = vadd.f32 %v652, %v449
        %v707 = vadd.f32 %v657, %v455
        %v708 = vadd.f32 %v660, %v459
        %v709 = vadd.f32 %v665, %v465
        %v710 = vadd.f32 %v668, %v469
        %v711 = vadd.f32 %v673, %v475
        %v712 = vadd.f32 %v676, %v479
        %v713 = vadd.f32 %v681, %v485
        %v714 = vadd.f32 %v684, %v489
        %v715 = vadd.f32 %v689, %v495
        %v716 = vadd.f32 %v692, %v499
        %v717 = vadd.f32 %v697, %v505
        %v718 = vadd.f32 %v700, %v509
        %v719 = vlaneseq
        %v720 = vand.u32 %v719, 127
        %vm721 = vcmp.lt.s32.totalorder %v720, 16
        %v722 = vsel %vm721, 1, 0
        %v723 = vcvt.s32.f32 %v722
        %v724 = vmul.f32 %v703, %v723
        %v725 = vmul.f32 %v704, %v723
        %v726 = vmul.f32 %v705, %v723
        %v727 = vmul.f32 %v706, %v723
        %v728 = vmul.f32 %v707, %v723
        %v729 = vmul.f32 %v708, %v723
        %v730 = vmul.f32 %v709, %v723
        %v731 = vmul.f32 %v710, %v723
        %v732 = vmul.f32 %v711, %v723
        %v733 = vmul.f32 %v712, %v723
        %v734 = vmul.f32 %v713, %v723
        %v735 = vmul.f32 %v714, %v723
        %v736 = vmul.f32 %v715, %v723
        %v737 = vmul.f32 %v716, %v723
        %v738 = vmul.f32 %v717, %v723
        %v739 = vmul.f32 %v718, %v723
        %740 = vadd.xlane.f32.xlu0 %v724
        %v741 = vpop.xlane.xlu0 %740
        %742 = vadd.xlane.f32.xlu0 %v725
        %v743 = vpop.xlane.xlu0 %742
        %744 = vadd.xlane.f32.xlu0 %v726
        %v745 = vpop.xlane.xlu0 %744
        %746 = vadd.xlane.f32.xlu0 %v727
        %v747 = vpop.xlane.xlu0 %746
        %748 = vadd.xlane.f32.xlu0 %v728
        %v749 = vpop.xlane.xlu0 %748
        %750 = vadd.xlane.f32.xlu0 %v729
        %v751 = vpop.xlane.xlu0 %750
        %752 = vadd.xlane.f32.xlu0 %v730
        %v753 = vpop.xlane.xlu0 %752
        %754 = vadd.xlane.f32.xlu0 %v731
        %v755 = vpop.xlane.xlu0 %754
        %756 = vadd.xlane.f32.xlu0 %v732
        %v757 = vpop.xlane.xlu0 %756
        %758 = vadd.xlane.f32.xlu0 %v733
        %v759 = vpop.xlane.xlu0 %758
        %760 = vadd.xlane.f32.xlu0 %v734
        %v761 = vpop.xlane.xlu0 %760
        %762 = vadd.xlane.f32.xlu0 %v735
        %v763 = vpop.xlane.xlu0 %762
        %764 = vadd.xlane.f32.xlu0 %v736
        %v765 = vpop.xlane.xlu0 %764
        %766 = vadd.xlane.f32.xlu0 %v737
        %v767 = vpop.xlane.xlu0 %766
        %768 = vadd.xlane.f32.xlu0 %v738
        %v769 = vpop.xlane.xlu0 %768
        %770 = vadd.xlane.f32.xlu0 %v739
        %v771 = vpop.xlane.xlu0 %770
        %v772 = vmul.f32 %v741, 0.0625
        %v773 = vmul.f32 %v743, 0.0625
        %v774 = vmul.f32 %v745, 0.0625
        %v775 = vmul.f32 %v747, 0.0625
        %v776 = vmul.f32 %v749, 0.0625
        %v777 = vmul.f32 %v751, 0.0625
        %v778 = vmul.f32 %v753, 0.0625
        %v779 = vmul.f32 %v755, 0.0625
        %v780 = vmul.f32 %v757, 0.0625
        %v781 = vmul.f32 %v759, 0.0625
        %v782 = vmul.f32 %v761, 0.0625
        %v783 = vmul.f32 %v763, 0.0625
        %v784 = vmul.f32 %v765, 0.0625
        %v785 = vmul.f32 %v767, 0.0625
        %v786 = vmul.f32 %v769, 0.0625
        %v787 = vmul.f32 %v771, 0.0625
        %v788 = vsub.f32 %v703, %v772
        %v789 = vsub.f32 %v704, %v773
        %v790 = vsub.f32 %v705, %v774
        %v791 = vsub.f32 %v706, %v775
        %v792 = vsub.f32 %v707, %v776
        %v793 = vsub.f32 %v708, %v777
        %v794 = vsub.f32 %v709, %v778
        %v795 = vsub.f32 %v710, %v779
        %v796 = vsub.f32 %v711, %v780
        %v797 = vsub.f32 %v712, %v781
        %v798 = vsub.f32 %v713, %v782
        %v799 = vsub.f32 %v714, %v783
        %v800 = vsub.f32 %v715, %v784
        %v801 = vsub.f32 %v716, %v785
        %v802 = vsub.f32 %v717, %v786
        %v803 = vsub.f32 %v718, %v787
        %v804 = vmul.f32 %v788, %v723
        %v805 = vmul.f32 %v789, %v723
        %v806 = vmul.f32 %v790, %v723
        %v807 = vmul.f32 %v791, %v723
        %v808 = vmul.f32 %v792, %v723
        %v809 = vmul.f32 %v793, %v723
        %v810 = vmul.f32 %v794, %v723
        %v811 = vmul.f32 %v795, %v723
        %v812 = vmul.f32 %v796, %v723
        %v813 = vmul.f32 %v797, %v723
        %v814 = vmul.f32 %v798, %v723
        %v815 = vmul.f32 %v799, %v723
        %v816 = vmul.f32 %v800, %v723
        %v817 = vmul.f32 %v801, %v723
        %v818 = vmul.f32 %v802, %v723
        %v819 = vmul.f32 %v803, %v723
        %v820 = vmul.f32 %v804, %v804
        %v821 = vmul.f32 %v805, %v805
        %v822 = vmul.f32 %v806, %v806
        %v823 = vmul.f32 %v807, %v807
        %v824 = vmul.f32 %v808, %v808
        %v825 = vmul.f32 %v809, %v809
        %v826 = vmul.f32 %v810, %v810
        %v827 = vmul.f32 %v811, %v811
        %v828 = vmul.f32 %v812, %v812
        %v829 = vmul.f32 %v813, %v813
        %v830 = vmul.f32 %v814, %v814
        %v831 = vmul.f32 %v815, %v815
        %v832 = vmul.f32 %v816, %v816
        %v833 = vmul.f32 %v817, %v817
        %v834 = vmul.f32 %v818, %v818
        %v835 = vmul.f32 %v819, %v819
        %836 = vadd.xlane.f32.xlu0 %v820
        %v837 = vpop.xlane.xlu0 %836
        %838 = vadd.xlane.f32.xlu0 %v821
        %v839 = vpop.xlane.xlu0 %838
        %840 = vadd.xlane.f32.xlu0 %v822
        %v841 = vpop.xlane.xlu0 %840
        %842 = vadd.xlane.f32.xlu0 %v823
        %v843 = vpop.xlane.xlu0 %842
        %844 = vadd.xlane.f32.xlu0 %v824
        %v845 = vpop.xlane.xlu0 %844
        %846 = vadd.xlane.f32.xlu0 %v825
        %v847 = vpop.xlane.xlu0 %846
        %848 = vadd.xlane.f32.xlu0 %v826
        %v849 = vpop.xlane.xlu0 %848
        %850 = vadd.xlane.f32.xlu0 %v827
        %v851 = vpop.xlane.xlu0 %850
        %852 = vadd.xlane.f32.xlu0 %v828
        %v853 = vpop.xlane.xlu0 %852
        %854 = vadd.xlane.f32.xlu0 %v829
        %v855 = vpop.xlane.xlu0 %854
        %856 = vadd.xlane.f32.xlu0 %v830
        %v857 = vpop.xlane.xlu0 %856
        %858 = vadd.xlane.f32.xlu0 %v831
        %v859 = vpop.xlane.xlu0 %858
        %860 = vadd.xlane.f32.xlu0 %v832
        %v861 = vpop.xlane.xlu0 %860
        %862 = vadd.xlane.f32.xlu0 %v833
        %v863 = vpop.xlane.xlu0 %862
        %864 = vadd.xlane.f32.xlu0 %v834
        %v865 = vpop.xlane.xlu0 %864
        %866 = vadd.xlane.f32.xlu0 %v835
        %v867 = vpop.xlane.xlu0 %866
        %v868 = vmul.f32 %v837, 0.0625
        %v869 = vmul.f32 %v839, 0.0625
        %v870 = vmul.f32 %v841, 0.0625
        %v871 = vmul.f32 %v843, 0.0625
        %v872 = vmul.f32 %v845, 0.0625
        %v873 = vmul.f32 %v847, 0.0625
        %v874 = vmul.f32 %v849, 0.0625
        %v875 = vmul.f32 %v851, 0.0625
        %v876 = vmul.f32 %v853, 0.0625
        %v877 = vmul.f32 %v855, 0.0625
        %v878 = vmul.f32 %v857, 0.0625
        %v879 = vmul.f32 %v859, 0.0625
        %v880 = vmul.f32 %v861, 0.0625
        %v881 = vmul.f32 %v863, 0.0625
        %v882 = vmul.f32 %v865, 0.0625
        %v883 = vmul.f32 %v867, 0.0625
        %v884 = vadd.f32 %v868, 1e-05
        %v885 = vadd.f32 %v869, 1e-05
        %v886 = vadd.f32 %v870, 1e-05
        %v887 = vadd.f32 %v871, 1e-05
        %v888 = vadd.f32 %v872, 1e-05
        %v889 = vadd.f32 %v873, 1e-05
        %v890 = vadd.f32 %v874, 1e-05
        %v891 = vadd.f32 %v875, 1e-05
        %v892 = vadd.f32 %v876, 1e-05
        %v893 = vadd.f32 %v877, 1e-05
        %v894 = vadd.f32 %v878, 1e-05
        %v895 = vadd.f32 %v879, 1e-05
        %v896 = vadd.f32 %v880, 1e-05
        %v897 = vadd.f32 %v881, 1e-05
        %v898 = vadd.f32 %v882, 1e-05
        %v899 = vadd.f32 %v883, 1e-05
        %v900 = vrsqrt.pop %v884
        %v901 = vrsqrt.pop %v885
        %v902 = vrsqrt.pop %v886
        %v903 = vrsqrt.pop %v887
        %v904 = vrsqrt.pop %v888
        %v905 = vrsqrt.pop %v889
        %v906 = vrsqrt.pop %v890
        %v907 = vrsqrt.pop %v891
        %v908 = vrsqrt.pop %v892
        %v909 = vrsqrt.pop %v893
        %v910 = vrsqrt.pop %v894
        %v911 = vrsqrt.pop %v895
        %v912 = vrsqrt.pop %v896
        %v913 = vrsqrt.pop %v897
        %v914 = vrsqrt.pop %v898
        %v915 = vrsqrt.pop %v899
        %v916 = vmul.f32 %v788, %v900
        %v917 = vmul.f32 %v789, %v901
        %v918 = vmul.f32 %v790, %v902
        %v919 = vmul.f32 %v791, %v903
        %v920 = vmul.f32 %v792, %v904
        %v921 = vmul.f32 %v793, %v905
        %v922 = vmul.f32 %v794, %v906
        %v923 = vmul.f32 %v795, %v907
        %v924 = vmul.f32 %v796, %v908
        %v925 = vmul.f32 %v797, %v909
        %v926 = vmul.f32 %v798, %v910
        %v927 = vmul.f32 %v799, %v911
        %v928 = vmul.f32 %v800, %v912
        %v929 = vmul.f32 %v801, %v913
        %v930 = vmul.f32 %v802, %v914
        %v931 = vmul.f32 %v803, %v915
        %v932 = vld [vmem:[%s5] sm:$0x1]
        %v934 = vlaneseq
        %v935 = vshrl.u32 %v934, 7
        %v936 = vsub.s32 0, %v935
        %v937 = vrot.slane %v932, %v936
        %v939 = vmul.f32 %v916, %v937
        %v940 = vmul.f32 %v917, %v937
        %v941 = vmul.f32 %v918, %v937
        %v942 = vmul.f32 %v919, %v937
        %v943 = vmul.f32 %v920, %v937
        %v944 = vmul.f32 %v921, %v937
        %v945 = vmul.f32 %v922, %v937
        %v946 = vmul.f32 %v923, %v937
        %v947 = vmul.f32 %v924, %v937
        %v948 = vmul.f32 %v925, %v937
        %v949 = vmul.f32 %v926, %v937
        %v950 = vmul.f32 %v927, %v937
        %v951 = vmul.f32 %v928, %v937
        %v952 = vmul.f32 %v929, %v937
        %v953 = vmul.f32 %v930, %v937
        %v954 = vmul.f32 %v931, %v937
        %v955 = vld [vmem:[%s6] sm:$0x1]
        %v957 = vlaneseq
        %v958 = vshrl.u32 %v957, 7
        %v959 = vsub.s32 0, %v958
        %v960 = vrot.slane %v955, %v959
        %v962 = vadd.f32 %v939, %v960
        %v963 = vadd.f32 %v940, %v960
        %v964 = vadd.f32 %v941, %v960
        %v965 = vadd.f32 %v942, %v960
        %v966 = vadd.f32 %v943, %v960
        %v967 = vadd.f32 %v944, %v960
        %v968 = vadd.f32 %v945, %v960
        %v969 = vadd.f32 %v946, %v960
        %v970 = vadd.f32 %v947, %v960
        %v971 = vadd.f32 %v948, %v960
        %v972 = vadd.f32 %v949, %v960
        %v973 = vadd.f32 %v950, %v960
        %v974 = vadd.f32 %v951, %v960
        %v975 = vadd.f32 %v952, %v960
        %v976 = vadd.f32 %v953, %v960
        %v977 = vadd.f32 %v954, %v960
        %978 = vst [vmem:[%s272] sm:$0xff] %v962
        %979 = vst [vmem:[%s272 + $0x8] sm:$0xff] %v963
        %980 = vst [vmem:[%s272 + $0x10] sm:$0xff] %v964
        %981 = vst [vmem:[%s272 + $0x18] sm:$0xff] %v965
        %982 = vst [vmem:[%s272 + $0x20] sm:$0xff] %v966
        %983 = vst [vmem:[%s272 + $0x28] sm:$0xff] %v967
        %984 = vst [vmem:[%s272 + $0x30] sm:$0xff] %v968
        %985 = vst [vmem:[%s272 + $0x38] sm:$0xff] %v969
        %986 = vst [vmem:[%s272 + $0x40] sm:$0xff] %v970
        %987 = vst [vmem:[%s272 + $0x48] sm:$0xff] %v971
        %988 = vst [vmem:[%s272 + $0x50] sm:$0xff] %v972
        %989 = vst [vmem:[%s272 + $0x58] sm:$0xff] %v973
        %990 = vst [vmem:[%s272 + $0x60] sm:$0xff] %v974
        %991 = vst [vmem:[%s272 + $0x68] sm:$0xff] %v975
        %992 = vst [vmem:[%s272 + $0x70] sm:$0xff] %v976
        %993 = vst [vmem:[%s272 + $0x78] sm:$0xff] %v977
        %s994 = sand.u32 %s181, 1
        %s995 = scalar_lea.sflag [#allocation3], %s994
        %s996 = sand.u32 %s181, 1
        %s997 = smul.addr %s996, 128
        %s998 = scalar_lea.vmem [#allocation2], %s997
        // Predicated region
        $region49: #{tpu_custom_call.1} parent=47 // pred_check
          %p999 = pneg %p191
        $region50: #{tpu_custom_call.1} parent=47 // pred_check_branch
          %1001 = sbr.rel (%p999) target = $region52
        $region51: #{tpu_custom_call.1} parent=47 // pred_region
          %s1002 = smul.u32 16, %s21
          %s1004 = ssub.s32 2048, 2048
          %1005 = vsyncadd %s995, %s1004
          %s1006 = smul.addr %s1002, 128
          %s1007 = scalar_lea.hbm %s7, %s1006
          %s1008 = sshll.u32 %s998, 4
          %s1009 = int_to_ptr.vmem [resolvable:$true] %s1008
          %1014 = dma.vmem_to_hbm [thread:$0]  %s1009, 2048, %s1007, %s995, 128, 128, 8
        $region52: #{tpu_custom_call.1} parent=47 // pred_fallthru
          _
      $region48: #{tpu_custom_call.1} parent=5 // pred_fallthru
        _
      %p1015 = scmp.le.s32.totalorder 2, %s16
      // Predicated region
      $region53: #{tpu_custom_call.1} parent=5 // pred_check
        %p1016 = pneg %p1015
      $region54: #{tpu_custom_call.1} parent=5 // pred_check_branch
        %1018 = sbr.rel (%p1016) target = $region56
      $region55: #{tpu_custom_call.1} parent=5 // pred_region
        %s1019 = ssub.s32 %s16, 2
        // Predicated region
        $region57: #{tpu_custom_call.1} parent=55 // pred_check
          %p1020 = pneg %p197
        $region58: #{tpu_custom_call.1} parent=55 // pred_check_branch
          %1022 = sbr.rel (%p1020) target = $region60
        $region59: #{tpu_custom_call.1} parent=55 // pred_region
          %s1023 = sand.u32 %s182, 1
          %s1024 = scalar_lea.sflag [#allocation3], %s1023
          %s1025 = sand.u32 %s182, 1
          %s1026 = smul.addr %s1025, 128
          %s1027 = scalar_lea.vmem [#allocation2], %s1026
          %1028 = dma.done %s1024, 2048
        $region60: #{tpu_custom_call.1} parent=55 // pred_fallthru
          _
      $region56: #{tpu_custom_call.1} parent=5 // pred_fallthru
        _
    $region6: #{tpu_custom_call.1} parent=1 // loop_footer
      %s20 = sadd.s32 1, %s16
    $region7: #{tpu_custom_call.1} parent=1 // loop_footer_branch
      %15 = sbr.rel target = $region3
    $region8: #{tpu_custom_call.1} parent=1 // loop_exit
      _
    %1029 = vsyncpa [#allocation3], 1
    %s1030 = scalar_lea.sflag [#allocation3], 1
    %1031 = vsyncpa %s1030, 1

</llo_original>
